<compile_context>
chip_gen: v5e
topology: v5e:2x2
jax: 0.10.0
libtpu: 0.0.40
codegen_flags: <defaults>
</compile_context>

<pallas_src>
import jax
import jax.numpy as jnp
from jax import lax
from jax.experimental import pallas as pl
from jax.experimental.pallas import tpu as pltpu

EPS = 1e-3


def conv1x1_bn_kernel(x_ref, w_ref, gamma_ref, beta_ref, o_ref):
    # x_ref:     [Cin, P]    (P = N*H*W pixels, lane axis)
    # w_ref:     [Cout, Cin]
    # gamma_ref: [Cout, 1]
    # beta_ref:  [Cout, 1]
    # o_ref:     [Cout, P]
    # 1x1 conv == matmul on the MXU, f32 accumulation. Output channels live on
    # the sublane axis, pixels on the lane axis -> native NCHW layout.
    y = jnp.dot(w_ref[...], x_ref[...], preferred_element_type=jnp.float32)  # [Cout, P]

    # Single-pass BatchNorm2d (training-mode) statistics per output channel:
    # reduce over the pixel (lane) axis.
    inv_count = jnp.float32(1.0 / y.shape[1])
    s = jnp.sum(y, axis=1, keepdims=True)          # [Cout, 1]
    sq = jnp.sum(y * y, axis=1, keepdims=True)     # [Cout, 1]
    m = s * inv_count
    var = sq * inv_count - m * m                   # biased variance

    # Fold normalization + affine into a single per-channel scale/shift.
    scale = lax.rsqrt(var + EPS) * gamma_ref[...]  # [Cout, 1]
    shift = beta_ref[...] - m * scale              # [Cout, 1]
    o_ref[...] = (y * scale + shift).astype(o_ref.dtype)


def conv1x1_bn(x_nchw, w_oihw, gamma, beta):
    """x_nchw: [N, Cin, H, W]; w_oihw: [Cout, Cin, 1, 1]; gamma/beta: [Cout]."""
    N, Cin, H, W = x_nchw.shape
    Cout = w_oihw.shape[0]
    P = N * H * W

    # Native-layout view: for N == 1 this is a pure reshape (no data movement).
    if N == 1:
        x2d = x_nchw.reshape(Cin, P)
    else:
        x2d = jnp.transpose(x_nchw, (1, 0, 2, 3)).reshape(Cin, P)

    w2d = w_oihw.reshape(Cout, Cin)
    gamma2 = gamma.reshape(Cout, 1)
    beta2 = beta.reshape(Cout, 1)

    y2d = pl.pallas_call(
        conv1x1_bn_kernel,
        out_shape=jax.ShapeDtypeStruct((Cout, P), x_nchw.dtype),
        # Whole problem (~1.2 MiB) fits in VMEM -> single full-array blocks,
        # grid-less call; the BN reduction over all pixels stays inside one
        # kernel invocation.
        in_specs=[
            pl.BlockSpec(memory_space=pltpu.MemorySpace.VMEM),
            pl.BlockSpec(memory_space=pltpu.MemorySpace.VMEM),
            pl.BlockSpec(memory_space=pltpu.MemorySpace.VMEM),
            pl.BlockSpec(memory_space=pltpu.MemorySpace.VMEM),
        ],
        out_specs=pl.BlockSpec(memory_space=pltpu.MemorySpace.VMEM),
        cost_estimate=pl.CostEstimate(
            flops=2 * P * Cin * Cout,
            transcendentals=Cout,
            bytes_accessed=(P * Cin + Cin * Cout + P * Cout + 2 * Cout) * 4,
        ),
    )(x2d, w2d, gamma2, beta2)

    # [Cout, P] -> NCHW (pure reshape for N == 1).
    if N == 1:
        return y2d.reshape(1, Cout, H, W)
    return jnp.transpose(y2d.reshape(Cout, N, H, W), (1, 0, 2, 3))


def reference(x_nchw, w_oihw, gamma, beta):
    """Pure-JAX reference (conv1x1 + training-mode batchnorm), PyTorch semantics."""
    N, Cin, H, W = x_nchw.shape
    Cout = w_oihw.shape[0]
    x_flat = jnp.transpose(x_nchw, (0, 2, 3, 1)).reshape(-1, Cin)
    y = x_flat @ jnp.transpose(w_oihw.reshape(Cout, Cin))
    m = jnp.mean(y, axis=0, keepdims=True)
    v = jnp.mean((y - m) ** 2, axis=0, keepdims=True)
    out = (y - m) / jnp.sqrt(v + EPS) * gamma[None, :] + beta[None, :]
    return jnp.transpose(out.reshape(N, H, W, Cout), (0, 3, 1, 2))


if __name__ == "__main__":
    key = jax.random.PRNGKey(0)
    k_x, k_w = jax.random.split(key)

    # Shapes implied by the module: input [1, 768, 12, 12], weight [192, 768, 1, 1].
    N, Cin, H, W = 1, 768, 12, 12
    Cout = 192

    x = jax.random.normal(k_x, (N, Cin, H, W), dtype=jnp.float32)
    # Deterministic conv weight init (kaiming-uniform-ish scale).
    bound = 1.0 / (Cin ** 0.5)
    w = jax.random.uniform(k_w, (Cout, Cin, 1, 1), dtype=jnp.float32,
                           minval=-bound, maxval=bound)
    gamma = jnp.ones((Cout,), dtype=jnp.float32)   # BatchNorm2d affine weight
    beta = jnp.zeros((Cout,), dtype=jnp.float32)   # BatchNorm2d affine bias

    out = conv1x1_bn(x, w, gamma, beta)
    out = jax.block_until_ready(out)

    ref = reference(x, w, gamma, beta)
    assert out.shape == (N, Cout, H, W), out.shape
    assert jnp.allclose(out, ref, atol=5e-4, rtol=5e-4), \
        float(jnp.max(jnp.abs(out - ref)))

    print("KERNEL_OK")
</pallas_src>

<mosaic_0001>
module attributes {stable_mosaic.version = 11 : i64} {
  func.func @conv1x1_bn_kernel(%arg0: memref<768x144xf32, #tpu.memory_space<vmem>>, %arg1: memref<192x768xf32, #tpu.memory_space<vmem>>, %arg2: memref<192x1xf32, #tpu.memory_space<vmem>>, %arg3: memref<192x1xf32, #tpu.memory_space<vmem>>, %arg4: memref<192x144xf32, #tpu.memory_space<vmem>>) attributes {dimension_semantics = [], scalar_prefetch = 0 : i64, scratch_operands = 0 : i64, tpu.core_type = #tpu.core_type<tc>} {
    %c0 = arith.constant 0 : index
    %c0_0 = arith.constant 0 : index
    %0 = vector.load %arg1[%c0, %c0_0] : memref<192x768xf32, #tpu.memory_space<vmem>>, vector<192x768xf32>
    %c0_1 = arith.constant 0 : index
    %c0_2 = arith.constant 0 : index
    %1 = vector.load %arg0[%c0_1, %c0_2] : memref<768x144xf32, #tpu.memory_space<vmem>>, vector<768x144xf32>
    %cst = arith.constant dense<0.000000e+00> : vector<192x144xf32>
    %2 = tpu.matmul %0, %1, %cst {dimension_numbers = #tpu.dot_dimension_numbers<[1], [0], [0], [1], [0, 0, 1, 1], [], []>} : vector<192x768xf32>, vector<768x144xf32>, vector<192x144xf32> -> vector<192x144xf32>
    %cst_3 = arith.constant dense<0.000000e+00> : vector<192xf32>
    %3 = vector.multi_reduction <add>, %2, %cst_3 [1] : vector<192x144xf32> to vector<192xf32>
    %4 = vector.shape_cast %3 : vector<192xf32> to vector<192x1xf32>
    %5 = arith.mulf %2, %2 : vector<192x144xf32>
    %cst_4 = arith.constant dense<0.000000e+00> : vector<192xf32>
    %6 = vector.multi_reduction <add>, %5, %cst_4 [1] : vector<192x144xf32> to vector<192xf32>
    %7 = vector.shape_cast %6 : vector<192xf32> to vector<192x1xf32>
    %cst_5 = arith.constant 0.0069444445 : f32
    %8 = vector.broadcast %cst_5 : f32 to vector<192x1xf32>
    %9 = arith.mulf %4, %8 : vector<192x1xf32>
    %cst_6 = arith.constant 0.0069444445 : f32
    %10 = vector.broadcast %cst_6 : f32 to vector<192x1xf32>
    %11 = arith.mulf %7, %10 : vector<192x1xf32>
    %12 = arith.mulf %9, %9 : vector<192x1xf32>
    %13 = arith.subf %11, %12 : vector<192x1xf32>
    %cst_7 = arith.constant 1.000000e-03 : f32
    %14 = vector.broadcast %cst_7 : f32 to vector<192x1xf32>
    %15 = arith.addf %13, %14 : vector<192x1xf32>
    %16 = math.rsqrt %15 : vector<192x1xf32>
    %c0_8 = arith.constant 0 : index
    %c0_9 = arith.constant 0 : index
    %17 = vector.load %arg2[%c0_8, %c0_9] : memref<192x1xf32, #tpu.memory_space<vmem>>, vector<192x1xf32>
    %18 = arith.mulf %16, %17 : vector<192x1xf32>
    %c0_10 = arith.constant 0 : index
    %c0_11 = arith.constant 0 : index
    %19 = vector.load %arg3[%c0_10, %c0_11] : memref<192x1xf32, #tpu.memory_space<vmem>>, vector<192x1xf32>
    %20 = arith.mulf %9, %18 : vector<192x1xf32>
    %21 = arith.subf %19, %20 : vector<192x1xf32>
    %22 = vector.broadcast %18 : vector<192x1xf32> to vector<192x144xf32>
    %23 = arith.mulf %2, %22 : vector<192x144xf32>
    %24 = vector.broadcast %21 : vector<192x1xf32> to vector<192x144xf32>
    %25 = arith.addf %23, %24 : vector<192x144xf32>
    %c0_12 = arith.constant 0 : index
    %c0_13 = arith.constant 0 : index
    %26 = vector.load %arg4[%c0_12, %c0_13] : memref<192x144xf32, #tpu.memory_space<vmem>>, vector<192x144xf32>
    tpu.vector_store %arg4[%c0_12, %c0_13], %25 {strides = array<i32>} : memref<192x144xf32, #tpu.memory_space<vmem>>, vector<192x144xf32>,
    return
  }
}

</mosaic_0001>

<llo_original>
// kernel: tpu_custom_call.1
$region0: #{tpu_custom_call.1}
  #allocation0 [shape = 'u32[]', space=smem, size = 0x4, offset = 0x4, fixed_abs, tag = 'smem constant byte address 0x4 - core index']
  #allocation1 [shape = 'u32[72,128]{1,0:T(1,128)}', space=vmem, size = 0x9000, scoped, tag = 'internal scratch']
  %s0 = inlined_call_operand.vmem [shape: f32[768,144], index: 0, kind: input, shape index: {}]
  %s1 = inlined_call_operand.vmem [shape: f32[192,768], index: 1, kind: input, shape index: {}]
  %s2 = inlined_call_operand.vmem [shape: f32[192,1], index: 2, kind: input, shape index: {}]
  %s3 = inlined_call_operand.vmem [shape: f32[192,1], index: 3, kind: input, shape index: {}]
  %s4 = inlined_call_operand.vmem [shape: f32[192,144], index: 4, kind: output, shape index: {}]
  %s5 = sld [smem:[#allocation0]]
  $region26: #{tpu_custom_call.1} parent=0
    _
  %s7 = ssub.s32 1, %s5
  %s8 = scalar_select 0, %s7, %s5
  // Predicated region
  $region2: #{tpu_custom_call.1} parent=0 // pred_check
    _
  $region3: #{tpu_custom_call.1} parent=0 // pred_check_branch
    %10 = sbr.rel (0) target = $region5
  $region4: #{tpu_custom_call.1} parent=0 // pred_region
    _
  $region5: #{tpu_custom_call.1} parent=0 // pred_fallthru
    _
  // Predicated region
  $region6: #{tpu_custom_call.1} parent=0 // pred_check
    _
  $region7: #{tpu_custom_call.1} parent=0 // pred_check_branch
    %12 = sbr.rel (0) target = $region9
  $region8: #{tpu_custom_call.1} parent=0 // pred_region
    _
  $region9: #{tpu_custom_call.1} parent=0 // pred_fallthru
    _
  // Predicated region
  $region10: #{tpu_custom_call.1} parent=0 // pred_check
    _
  $region11: #{tpu_custom_call.1} parent=0 // pred_check_branch
    %14 = sbr.rel (0) target = $region13
  $region12: #{tpu_custom_call.1} parent=0 // pred_region
    _
  $region13: #{tpu_custom_call.1} parent=0 // pred_fallthru
    _
  // Predicated region
  $region14: #{tpu_custom_call.1} parent=0 // pred_check
    _
  $region15: #{tpu_custom_call.1} parent=0 // pred_check_branch
    %16 = sbr.rel (0) target = $region17
  $region16: #{tpu_custom_call.1} parent=0 // pred_region
    _
  $region17: #{tpu_custom_call.1} parent=0 // pred_fallthru
    _
  %v17 = vld [vmem:[%s1] sm:$0xff]
  %v18 = vld [vmem:[%s1 + $0x8] sm:$0xff]
  %v19 = vld [vmem:[%s1 + $0x10] sm:$0xff]
  %v20 = vld [vmem:[%s1 + $0x18] sm:$0xff]
  %v21 = vld [vmem:[%s1 + $0x20] sm:$0xff]
  %v22 = vld [vmem:[%s1 + $0x28] sm:$0xff]
  %v23 = vld [vmem:[%s1 + $0x30] sm:$0xff]
  %v24 = vld [vmem:[%s1 + $0x38] sm:$0xff]
  %v25 = vld [vmem:[%s1 + $0x40] sm:$0xff]
  %v26 = vld [vmem:[%s1 + $0x48] sm:$0xff]
  %v27 = vld [vmem:[%s1 + $0x50] sm:$0xff]
  %v28 = vld [vmem:[%s1 + $0x58] sm:$0xff]
  %v29 = vld [vmem:[%s1 + $0x60] sm:$0xff]
  %v30 = vld [vmem:[%s1 + $0x68] sm:$0xff]
  %v31 = vld [vmem:[%s1 + $0x70] sm:$0xff]
  %v32 = vld [vmem:[%s1 + $0x78] sm:$0xff]
  %v33 = vld [vmem:[%s1 + $0x80] sm:$0xff]
  %v34 = vld [vmem:[%s1 + $0x88] sm:$0xff]
  %v35 = vld [vmem:[%s1 + $0x90] sm:$0xff]
  %v36 = vld [vmem:[%s1 + $0x98] sm:$0xff]
  %v37 = vld [vmem:[%s1 + $0xa0] sm:$0xff]
  %v38 = vld [vmem:[%s1 + $0xa8] sm:$0xff]
  %v39 = vld [vmem:[%s1 + $0xb0] sm:$0xff]
  %v40 = vld [vmem:[%s1 + $0xb8] sm:$0xff]
  %v41 = vld [vmem:[%s1 + $0xc0] sm:$0xff]
  %v42 = vld [vmem:[%s1 + $0xc8] sm:$0xff]
  %v43 = vld [vmem:[%s1 + $0xd0] sm:$0xff]
  %v44 = vld [vmem:[%s1 + $0xd8] sm:$0xff]
  %v45 = vld [vmem:[%s1 + $0xe0] sm:$0xff]
  %v46 = vld [vmem:[%s1 + $0xe8] sm:$0xff]
  %v47 = vld [vmem:[%s1 + $0xf0] sm:$0xff]
  %v48 = vld [vmem:[%s1 + $0xf8] sm:$0xff]
  %v49 = vld [vmem:[%s1 + $0x100] sm:$0xff]
  %v50 = vld [vmem:[%s1 + $0x108] sm:$0xff]
  %v51 = vld [vmem:[%s1 + $0x110] sm:$0xff]
  %v52 = vld [vmem:[%s1 + $0x118] sm:$0xff]
  %v53 = vld [vmem:[%s1 + $0x120] sm:$0xff]
  %v54 = vld [vmem:[%s1 + $0x128] sm:$0xff]
  %v55 = vld [vmem:[%s1 + $0x130] sm:$0xff]
  %v56 = vld [vmem:[%s1 + $0x138] sm:$0xff]
  %v57 = vld [vmem:[%s1 + $0x140] sm:$0xff]
  %v58 = vld [vmem:[%s1 + $0x148] sm:$0xff]
  %v59 = vld [vmem:[%s1 + $0x150] sm:$0xff]
  %v60 = vld [vmem:[%s1 + $0x158] sm:$0xff]
  %v61 = vld [vmem:[%s1 + $0x160] sm:$0xff]
  %v62 = vld [vmem:[%s1 + $0x168] sm:$0xff]
  %v63 = vld [vmem:[%s1 + $0x170] sm:$0xff]
  %v64 = vld [vmem:[%s1 + $0x178] sm:$0xff]
  %v65 = vld [vmem:[%s1 + $0x180] sm:$0xff]
  %v66 = vld [vmem:[%s1 + $0x188] sm:$0xff]
  %v67 = vld [vmem:[%s1 + $0x190] sm:$0xff]
  %v68 = vld [vmem:[%s1 + $0x198] sm:$0xff]
  %v69 = vld [vmem:[%s1 + $0x1a0] sm:$0xff]
  %v70 = vld [vmem:[%s1 + $0x1a8] sm:$0xff]
  %v71 = vld [vmem:[%s1 + $0x1b0] sm:$0xff]
  %v72 = vld [vmem:[%s1 + $0x1b8] sm:$0xff]
  %v73 = vld [vmem:[%s1 + $0x1c0] sm:$0xff]
  %v74 = vld [vmem:[%s1 + $0x1c8] sm:$0xff]
  %v75 = vld [vmem:[%s1 + $0x1d0] sm:$0xff]
  %v76 = vld [vmem:[%s1 + $0x1d8] sm:$0xff]
  %v77 = vld [vmem:[%s1 + $0x1e0] sm:$0xff]
  %v78 = vld [vmem:[%s1 + $0x1e8] sm:$0xff]
  %v79 = vld [vmem:[%s1 + $0x1f0] sm:$0xff]
  %v80 = vld [vmem:[%s1 + $0x1f8] sm:$0xff]
  %v81 = vld [vmem:[%s1 + $0x200] sm:$0xff]
  %v82 = vld [vmem:[%s1 + $0x208] sm:$0xff]
  %v83 = vld [vmem:[%s1 + $0x210] sm:$0xff]
  %v84 = vld [vmem:[%s1 + $0x218] sm:$0xff]
  %v85 = vld [vmem:[%s1 + $0x220] sm:$0xff]
  %v86 = vld [vmem:[%s1 + $0x228] sm:$0xff]
  %v87 = vld [vmem:[%s1 + $0x230] sm:$0xff]
  %v88 = vld [vmem:[%s1 + $0x238] sm:$0xff]
  %v89 = vld [vmem:[%s1 + $0x240] sm:$0xff]
  %v90 = vld [vmem:[%s1 + $0x248] sm:$0xff]
  %v91 = vld [vmem:[%s1 + $0x250] sm:$0xff]
  %v92 = vld [vmem:[%s1 + $0x258] sm:$0xff]
  %v93 = vld [vmem:[%s1 + $0x260] sm:$0xff]
  %v94 = vld [vmem:[%s1 + $0x268] sm:$0xff]
  %v95 = vld [vmem:[%s1 + $0x270] sm:$0xff]
  %v96 = vld [vmem:[%s1 + $0x278] sm:$0xff]
  %v97 = vld [vmem:[%s1 + $0x280] sm:$0xff]
  %v98 = vld [vmem:[%s1 + $0x288] sm:$0xff]
  %v99 = vld [vmem:[%s1 + $0x290] sm:$0xff]
  %v100 = vld [vmem:[%s1 + $0x298] sm:$0xff]
  %v101 = vld [vmem:[%s1 + $0x2a0] sm:$0xff]
  %v102 = vld [vmem:[%s1 + $0x2a8] sm:$0xff]
  %v103 = vld [vmem:[%s1 + $0x2b0] sm:$0xff]
  %v104 = vld [vmem:[%s1 + $0x2b8] sm:$0xff]
  %v105 = vld [vmem:[%s1 + $0x2c0] sm:$0xff]
  %v106 = vld [vmem:[%s1 + $0x2c8] sm:$0xff]
  %v107 = vld [vmem:[%s1 + $0x2d0] sm:$0xff]
  %v108 = vld [vmem:[%s1 + $0x2d8] sm:$0xff]
  %v109 = vld [vmem:[%s1 + $0x2e0] sm:$0xff]
  %v110 = vld [vmem:[%s1 + $0x2e8] sm:$0xff]
  %v111 = vld [vmem:[%s1 + $0x2f0] sm:$0xff]
  %v112 = vld [vmem:[%s1 + $0x2f8] sm:$0xff]
  %v113 = vld [vmem:[%s1 + $0x300] sm:$0xff]
  %v114 = vld [vmem:[%s1 + $0x308] sm:$0xff]
  %v115 = vld [vmem:[%s1 + $0x310] sm:$0xff]
  %v116 = vld [vmem:[%s1 + $0x318] sm:$0xff]
  %v117 = vld [vmem:[%s1 + $0x320] sm:$0xff]
  %v118 = vld [vmem:[%s1 + $0x328] sm:$0xff]
  %v119 = vld [vmem:[%s1 + $0x330] sm:$0xff]
  %v120 = vld [vmem:[%s1 + $0x338] sm:$0xff]
  %v121 = vld [vmem:[%s1 + $0x340] sm:$0xff]
  %v122 = vld [vmem:[%s1 + $0x348] sm:$0xff]
  %v123 = vld [vmem:[%s1 + $0x350] sm:$0xff]
  %v124 = vld [vmem:[%s1 + $0x358] sm:$0xff]
  %v125 = vld [vmem:[%s1 + $0x360] sm:$0xff]
  %v126 = vld [vmem:[%s1 + $0x368] sm:$0xff]
  %v127 = vld [vmem:[%s1 + $0x370] sm:$0xff]
  %v128 = vld [vmem:[%s1 + $0x378] sm:$0xff]
  %v129 = vld [vmem:[%s1 + $0x380] sm:$0xff]
  %v130 = vld [vmem:[%s1 + $0x388] sm:$0xff]
  %v131 = vld [vmem:[%s1 + $0x390] sm:$0xff]
  %v132 = vld [vmem:[%s1 + $0x398] sm:$0xff]
  %v133 = vld [vmem:[%s1 + $0x3a0] sm:$0xff]
  %v134 = vld [vmem:[%s1 + $0x3a8] sm:$0xff]
  %v135 = vld [vmem:[%s1 + $0x3b0] sm:$0xff]
  %v136 = vld [vmem:[%s1 + $0x3b8] sm:$0xff]
  %v137 = vld [vmem:[%s1 + $0x3c0] sm:$0xff]
  %v138 = vld [vmem:[%s1 + $0x3c8] sm:$0xff]
  %v139 = vld [vmem:[%s1 + $0x3d0] sm:$0xff]
  %v140 = vld [vmem:[%s1 + $0x3d8] sm:$0xff]
  %v141 = vld [vmem:[%s1 + $0x3e0] sm:$0xff]
  %v142 = vld [vmem:[%s1 + $0x3e8] sm:$0xff]
  %v143 = vld [vmem:[%s1 + $0x3f0] sm:$0xff]
  %v144 = vld [vmem:[%s1 + $0x3f8] sm:$0xff]
  %v145 = vld [vmem:[%s1 + $0x400] sm:$0xff]
  %v146 = vld [vmem:[%s1 + $0x408] sm:$0xff]
  %v147 = vld [vmem:[%s1 + $0x410] sm:$0xff]
  %v148 = vld [vmem:[%s1 + $0x418] sm:$0xff]
  %v149 = vld [vmem:[%s1 + $0x420] sm:$0xff]
  %v150 = vld [vmem:[%s1 + $0x428] sm:$0xff]
  %v151 = vld [vmem:[%s1 + $0x430] sm:$0xff]
  %v152 = vld [vmem:[%s1 + $0x438] sm:$0xff]
  %v153 = vld [vmem:[%s1 + $0x440] sm:$0xff]
  %v154 = vld [vmem:[%s1 + $0x448] sm:$0xff]
  %v155 = vld [vmem:[%s1 + $0x450] sm:$0xff]
  %v156 = vld [vmem:[%s1 + $0x458] sm:$0xff]
  %v157 = vld [vmem:[%s1 + $0x460] sm:$0xff]
  %v158 = vld [vmem:[%s1 + $0x468] sm:$0xff]
  %v159 = vld [vmem:[%s1 + $0x470] sm:$0xff]
  %v160 = vld [vmem:[%s1 + $0x478] sm:$0xff]
  %v161 = vld [vmem:[%s0] sm:$0xff]
  %v162 = vld [vmem:[%s0 + $0x8] sm:$0xff]
  %v163 = vld [vmem:[%s0 + $0x10] sm:$0xff]
  %v164 = vld [vmem:[%s0 + $0x18] sm:$0xff]
  %v165 = vld [vmem:[%s0 + $0x20] sm:$0xff]
  %v166 = vld [vmem:[%s0 + $0x28] sm:$0xff]
  %v167 = vld [vmem:[%s0 + $0x30] sm:$0xff]
  %v168 = vld [vmem:[%s0 + $0x38] sm:$0xff]
  %v169 = vld [vmem:[%s0 + $0x40] sm:$0xff]
  %v170 = vld [vmem:[%s0 + $0x48] sm:$0xff]
  %v171 = vld [vmem:[%s0 + $0x50] sm:$0xff]
  %v172 = vld [vmem:[%s0 + $0x58] sm:$0xff]
  %v173 = vld [vmem:[%s0 + $0x60] sm:$0xff]
  %v174 = vld [vmem:[%s0 + $0x68] sm:$0xff]
  %v175 = vld [vmem:[%s0 + $0x70] sm:$0xff]
  %v176 = vld [vmem:[%s0 + $0x78] sm:$0xff]
  %v177 = vld [vmem:[%s0 + $0x80] sm:$0xff]
  %v178 = vld [vmem:[%s0 + $0x88] sm:$0xff]
  %v179 = vld [vmem:[%s0 + $0x90] sm:$0xff]
  %v180 = vld [vmem:[%s0 + $0x98] sm:$0xff]
  %v181 = vld [vmem:[%s0 + $0xa0] sm:$0xff]
  %v182 = vld [vmem:[%s0 + $0xa8] sm:$0xff]
  %v183 = vld [vmem:[%s0 + $0xb0] sm:$0xff]
  %v184 = vld [vmem:[%s0 + $0xb8] sm:$0xff]
  %v185 = vld [vmem:[%s0 + $0xc0] sm:$0xff]
  %v186 = vld [vmem:[%s0 + $0xc8] sm:$0xff]
  %v187 = vld [vmem:[%s0 + $0xd0] sm:$0xff]
  %v188 = vld [vmem:[%s0 + $0xd8] sm:$0xff]
  %v189 = vld [vmem:[%s0 + $0xe0] sm:$0xff]
  %v190 = vld [vmem:[%s0 + $0xe8] sm:$0xff]
  %v191 = vld [vmem:[%s0 + $0xf0] sm:$0xff]
  %v192 = vld [vmem:[%s0 + $0xf8] sm:$0xff]
  %v193 = vld [vmem:[%s0 + $0x100] sm:$0xff]
  %v194 = vld [vmem:[%s0 + $0x108] sm:$0xff]
  %v195 = vld [vmem:[%s0 + $0x110] sm:$0xff]
  %v196 = vld [vmem:[%s0 + $0x118] sm:$0xff]
  %v197 = vld [vmem:[%s0 + $0x120] sm:$0xff]
  %v198 = vld [vmem:[%s0 + $0x128] sm:$0xff]
  %v199 = vld [vmem:[%s0 + $0x130] sm:$0xff]
  %v200 = vld [vmem:[%s0 + $0x138] sm:$0xff]
  %v201 = vld [vmem:[%s0 + $0x140] sm:$0xff]
  %v202 = vld [vmem:[%s0 + $0x148] sm:$0xff]
  %v203 = vld [vmem:[%s0 + $0x150] sm:$0xff]
  %v204 = vld [vmem:[%s0 + $0x158] sm:$0xff]
  %v205 = vld [vmem:[%s0 + $0x160] sm:$0xff]
  %v206 = vld [vmem:[%s0 + $0x168] sm:$0xff]
  %v207 = vld [vmem:[%s0 + $0x170] sm:$0xff]
  %v208 = vld [vmem:[%s0 + $0x178] sm:$0xff]
  %v209 = vld [vmem:[%s0 + $0x180] sm:$0xff]
  %v210 = vld [vmem:[%s0 + $0x188] sm:$0xff]
  %v211 = vld [vmem:[%s0 + $0x190] sm:$0xff]
  %v212 = vld [vmem:[%s0 + $0x198] sm:$0xff]
  %v213 = vld [vmem:[%s0 + $0x1a0] sm:$0xff]
  %v214 = vld [vmem:[%s0 + $0x1a8] sm:$0xff]
  %v215 = vld [vmem:[%s0 + $0x1b0] sm:$0xff]
  %v216 = vld [vmem:[%s0 + $0x1b8] sm:$0xff]
  %v217 = vld [vmem:[%s0 + $0x1c0] sm:$0xff]
  %v218 = vld [vmem:[%s0 + $0x1c8] sm:$0xff]
  %v219 = vld [vmem:[%s0 + $0x1d0] sm:$0xff]
  %v220 = vld [vmem:[%s0 + $0x1d8] sm:$0xff]
  %v221 = vld [vmem:[%s0 + $0x1e0] sm:$0xff]
  %v222 = vld [vmem:[%s0 + $0x1e8] sm:$0xff]
  %v223 = vld [vmem:[%s0 + $0x1f0] sm:$0xff]
  %v224 = vld [vmem:[%s0 + $0x1f8] sm:$0xff]
  %v225 = vld [vmem:[%s0 + $0x200] sm:$0xff]
  %v226 = vld [vmem:[%s0 + $0x208] sm:$0xff]
  %v227 = vld [vmem:[%s0 + $0x210] sm:$0xff]
  %v228 = vld [vmem:[%s0 + $0x218] sm:$0xff]
  %v229 = vld [vmem:[%s0 + $0x220] sm:$0xff]
  %v230 = vld [vmem:[%s0 + $0x228] sm:$0xff]
  %v231 = vld [vmem:[%s0 + $0x230] sm:$0xff]
  %v232 = vld [vmem:[%s0 + $0x238] sm:$0xff]
  %v233 = vld [vmem:[%s0 + $0x240] sm:$0xff]
  %v234 = vld [vmem:[%s0 + $0x248] sm:$0xff]
  %v235 = vld [vmem:[%s0 + $0x250] sm:$0xff]
  %v236 = vld [vmem:[%s0 + $0x258] sm:$0xff]
  %v237 = vld [vmem:[%s0 + $0x260] sm:$0xff]
  %v238 = vld [vmem:[%s0 + $0x268] sm:$0xff]
  %v239 = vld [vmem:[%s0 + $0x270] sm:$0xff]
  %v240 = vld [vmem:[%s0 + $0x278] sm:$0xff]
  %v241 = vld [vmem:[%s0 + $0x280] sm:$0xff]
  %v242 = vld [vmem:[%s0 + $0x288] sm:$0xff]
  %v243 = vld [vmem:[%s0 + $0x290] sm:$0xff]
  %v244 = vld [vmem:[%s0 + $0x298] sm:$0xff]
  %v245 = vld [vmem:[%s0 + $0x2a0] sm:$0xff]
  %v246 = vld [vmem:[%s0 + $0x2a8] sm:$0xff]
  %v247 = vld [vmem:[%s0 + $0x2b0] sm:$0xff]
  %v248 = vld [vmem:[%s0 + $0x2b8] sm:$0xff]
  %v249 = vld [vmem:[%s0 + $0x2c0] sm:$0xff]
  %v250 = vld [vmem:[%s0 + $0x2c8] sm:$0xff]
  %v251 = vld [vmem:[%s0 + $0x2d0] sm:$0xff]
  %v252 = vld [vmem:[%s0 + $0x2d8] sm:$0xff]
  %v253 = vld [vmem:[%s0 + $0x2e0] sm:$0xff]
  %v254 = vld [vmem:[%s0 + $0x2e8] sm:$0xff]
  %v255 = vld [vmem:[%s0 + $0x2f0] sm:$0xff]
  %v256 = vld [vmem:[%s0 + $0x2f8] sm:$0xff]
  %v257 = vld [vmem:[%s0 + $0x300] sm:$0xff]
  %v258 = vld [vmem:[%s0 + $0x308] sm:$0xff]
  %v259 = vld [vmem:[%s0 + $0x310] sm:$0xff]
  %v260 = vld [vmem:[%s0 + $0x318] sm:$0xff]
  %v261 = vld [vmem:[%s0 + $0x320] sm:$0xff]
  %v262 = vld [vmem:[%s0 + $0x328] sm:$0xff]
  %v263 = vld [vmem:[%s0 + $0x330] sm:$0xff]
  %v264 = vld [vmem:[%s0 + $0x338] sm:$0xff]
  %v265 = vld [vmem:[%s0 + $0x340] sm:$0xff]
  %v266 = vld [vmem:[%s0 + $0x348] sm:$0xff]
  %v267 = vld [vmem:[%s0 + $0x350] sm:$0xff]
  %v268 = vld [vmem:[%s0 + $0x358] sm:$0xff]
  %v269 = vld [vmem:[%s0 + $0x360] sm:$0xff]
  %v270 = vld [vmem:[%s0 + $0x368] sm:$0xff]
  %v271 = vld [vmem:[%s0 + $0x370] sm:$0xff]
  %v272 = vld [vmem:[%s0 + $0x378] sm:$0xff]
  %v273 = vld [vmem:[%s0 + $0x380] sm:$0xff]
  %v274 = vld [vmem:[%s0 + $0x388] sm:$0xff]
  %v275 = vld [vmem:[%s0 + $0x390] sm:$0xff]
  %v276 = vld [vmem:[%s0 + $0x398] sm:$0xff]
  %v277 = vld [vmem:[%s0 + $0x3a0] sm:$0xff]
  %v278 = vld [vmem:[%s0 + $0x3a8] sm:$0xff]
  %v279 = vld [vmem:[%s0 + $0x3b0] sm:$0xff]
  %v280 = vld [vmem:[%s0 + $0x3b8] sm:$0xff]
  %v281 = vld [vmem:[%s0 + $0x3c0] sm:$0xff]
  %v282 = vld [vmem:[%s0 + $0x3c8] sm:$0xff]
  %v283 = vld [vmem:[%s0 + $0x3d0] sm:$0xff]
  %v284 = vld [vmem:[%s0 + $0x3d8] sm:$0xff]
  %v285 = vld [vmem:[%s0 + $0x3e0] sm:$0xff]
  %v286 = vld [vmem:[%s0 + $0x3e8] sm:$0xff]
  %v287 = vld [vmem:[%s0 + $0x3f0] sm:$0xff]
  %v288 = vld [vmem:[%s0 + $0x3f8] sm:$0xff]
  %v289 = vld [vmem:[%s0 + $0x400] sm:$0xff]
  %v290 = vld [vmem:[%s0 + $0x408] sm:$0xff]
  %v291 = vld [vmem:[%s0 + $0x410] sm:$0xff]
  %v292 = vld [vmem:[%s0 + $0x418] sm:$0xff]
  %v293 = vld [vmem:[%s0 + $0x420] sm:$0xff]
  %v294 = vld [vmem:[%s0 + $0x428] sm:$0xff]
  %v295 = vld [vmem:[%s0 + $0x430] sm:$0xff]
  %v296 = vld [vmem:[%s0 + $0x438] sm:$0xff]
  %v297 = vld [vmem:[%s0 + $0x440] sm:$0xff]
  %v298 = vld [vmem:[%s0 + $0x448] sm:$0xff]
  %v299 = vld [vmem:[%s0 + $0x450] sm:$0xff]
  %v300 = vld [vmem:[%s0 + $0x458] sm:$0xff]
  %v301 = vld [vmem:[%s0 + $0x460] sm:$0xff]
  %v302 = vld [vmem:[%s0 + $0x468] sm:$0xff]
  %v303 = vld [vmem:[%s0 + $0x470] sm:$0xff]
  %v304 = vld [vmem:[%s0 + $0x478] sm:$0xff]
  %v305 = vld [vmem:[%s0 + $0x480] sm:$0xff]
  %v306 = vld [vmem:[%s0 + $0x488] sm:$0xff]
  %v307 = vld [vmem:[%s0 + $0x490] sm:$0xff]
  %v308 = vld [vmem:[%s0 + $0x498] sm:$0xff]
  %v309 = vld [vmem:[%s0 + $0x4a0] sm:$0xff]
  %v310 = vld [vmem:[%s0 + $0x4a8] sm:$0xff]
  %v311 = vld [vmem:[%s0 + $0x4b0] sm:$0xff]
  %v312 = vld [vmem:[%s0 + $0x4b8] sm:$0xff]
  %v313 = vld [vmem:[%s0 + $0x4c0] sm:$0xff]
  %v314 = vld [vmem:[%s0 + $0x4c8] sm:$0xff]
  %v315 = vld [vmem:[%s0 + $0x4d0] sm:$0xff]
  %v316 = vld [vmem:[%s0 + $0x4d8] sm:$0xff]
  %v317 = vld [vmem:[%s0 + $0x4e0] sm:$0xff]
  %v318 = vld [vmem:[%s0 + $0x4e8] sm:$0xff]
  %v319 = vld [vmem:[%s0 + $0x4f0] sm:$0xff]
  %v320 = vld [vmem:[%s0 + $0x4f8] sm:$0xff]
  %v321 = vld [vmem:[%s0 + $0x500] sm:$0xff]
  %v322 = vld [vmem:[%s0 + $0x508] sm:$0xff]
  %v323 = vld [vmem:[%s0 + $0x510] sm:$0xff]
  %v324 = vld [vmem:[%s0 + $0x518] sm:$0xff]
  %v325 = vld [vmem:[%s0 + $0x520] sm:$0xff]
  %v326 = vld [vmem:[%s0 + $0x528] sm:$0xff]
  %v327 = vld [vmem:[%s0 + $0x530] sm:$0xff]
  %v328 = vld [vmem:[%s0 + $0x538] sm:$0xff]
  %v329 = vld [vmem:[%s0 + $0x540] sm:$0xff]
  %v330 = vld [vmem:[%s0 + $0x548] sm:$0xff]
  %v331 = vld [vmem:[%s0 + $0x550] sm:$0xff]
  %v332 = vld [vmem:[%s0 + $0x558] sm:$0xff]
  %v333 = vld [vmem:[%s0 + $0x560] sm:$0xff]
  %v334 = vld [vmem:[%s0 + $0x568] sm:$0xff]
  %v335 = vld [vmem:[%s0 + $0x570] sm:$0xff]
  %v336 = vld [vmem:[%s0 + $0x578] sm:$0xff]
  %v337 = vld [vmem:[%s0 + $0x580] sm:$0xff]
  %v338 = vld [vmem:[%s0 + $0x588] sm:$0xff]
  %v339 = vld [vmem:[%s0 + $0x590] sm:$0xff]
  %v340 = vld [vmem:[%s0 + $0x598] sm:$0xff]
  %v341 = vld [vmem:[%s0 + $0x5a0] sm:$0xff]
  %v342 = vld [vmem:[%s0 + $0x5a8] sm:$0xff]
  %v343 = vld [vmem:[%s0 + $0x5b0] sm:$0xff]
  %v344 = vld [vmem:[%s0 + $0x5b8] sm:$0xff]
  %v345 = vld [vmem:[%s0 + $0x5c0] sm:$0xff]
  %v346 = vld [vmem:[%s0 + $0x5c8] sm:$0xff]
  %v347 = vld [vmem:[%s0 + $0x5d0] sm:$0xff]
  %v348 = vld [vmem:[%s0 + $0x5d8] sm:$0xff]
  %v349 = vld [vmem:[%s0 + $0x5e0] sm:$0xff]
  %v350 = vld [vmem:[%s0 + $0x5e8] sm:$0xff]
  %v351 = vld [vmem:[%s0 + $0x5f0] sm:$0xff]
  %v352 = vld [vmem:[%s0 + $0x5f8] sm:$0xff]
  %353 = vmatpush.msra.mxu0 %v191
  %354 = vmatpush.msra.mxu0 %v189
  %355 = vmatpush.msra.mxu0 %v187
  %356 = vmatpush.msra.mxu0 %v185
  %357 = vmatpush.msra.mxu0 %v183
  %358 = vmatpush.msra.mxu0 %v181
  %359 = vmatpush.msra.mxu0 %v179
  %360 = vmatpush.msra.mxu0 %v177
  %361 = vmatpush.msra.mxu0 %v175
  %362 = vmatpush.msra.mxu0 %v173
  %363 = vmatpush.msra.mxu0 %v171
  %364 = vmatpush.msra.mxu0 %v169
  %365 = vmatpush.msra.mxu0 %v167
  %366 = vmatpush.msra.mxu0 %v165
  %367 = vmatpush.msra.mxu0 %v163
  %368 = vmatpush.msra.mxu0 %v161
  %369 = vmatmul.f32.gmra.mxu0 %v17
  %v370 = vpop.f32.mrf.mxu0
  %v371 = vadd.f32 0.0, %v370
  %372 = vmatmul.f32.gmra.mxu0 %v23
  %v373 = vpop.f32.mrf.mxu0
  %v374 = vadd.f32 0.0, %v373
  %375 = vmatmul.f32.gmra.mxu0 %v29
  %v376 = vpop.f32.mrf.mxu0
  %v377 = vadd.f32 0.0, %v376
  %378 = vmatmul.f32.gmra.mxu0 %v35
  %v379 = vpop.f32.mrf.mxu0
  %v380 = vadd.f32 0.0, %v379
  %381 = vmatmul.f32.gmra.mxu0 %v41
  %v382 = vpop.f32.mrf.mxu0
  %v383 = vadd.f32 0.0, %v382
  %384 = vmatmul.f32.gmra.mxu0 %v47
  %v385 = vpop.f32.mrf.mxu0
  %v386 = vadd.f32 0.0, %v385
  %387 = vmatmul.f32.gmra.mxu0 %v53
  %v388 = vpop.f32.mrf.mxu0
  %v389 = vadd.f32 0.0, %v388
  %390 = vmatmul.f32.gmra.mxu0 %v59
  %v391 = vpop.f32.mrf.mxu0
  %v392 = vadd.f32 0.0, %v391
  %393 = vmatmul.f32.gmra.mxu0 %v65
  %v394 = vpop.f32.mrf.mxu0
  %v395 = vadd.f32 0.0, %v394
  %396 = vmatmul.f32.gmra.mxu0 %v71
  %v397 = vpop.f32.mrf.mxu0
  %v398 = vadd.f32 0.0, %v397
  %399 = vmatmul.f32.gmra.mxu0 %v77
  %v400 = vpop.f32.mrf.mxu0
  %v401 = vadd.f32 0.0, %v400
  %402 = vmatmul.f32.gmra.mxu0 %v83
  %v403 = vpop.f32.mrf.mxu0
  %v404 = vadd.f32 0.0, %v403
  %405 = vmatmul.f32.gmra.mxu0 %v89
  %v406 = vpop.f32.mrf.mxu0
  %v407 = vadd.f32 0.0, %v406
  %408 = vmatmul.f32.gmra.mxu0 %v95
  %v409 = vpop.f32.mrf.mxu0
  %v410 = vadd.f32 0.0, %v409
  %411 = vmatmul.f32.gmra.mxu0 %v101
  %v412 = vpop.f32.mrf.mxu0
  %v413 = vadd.f32 0.0, %v412
  %414 = vmatmul.f32.gmra.mxu0 %v107
  %v415 = vpop.f32.mrf.mxu0
  %v416 = vadd.f32 0.0, %v415
  %417 = vmatmul.f32.gmra.mxu0 %v113
  %v418 = vpop.f32.mrf.mxu0
  %v419 = vadd.f32 0.0, %v418
  %420 = vmatmul.f32.gmra.mxu0 %v119
  %v421 = vpop.f32.mrf.mxu0
  %v422 = vadd.f32 0.0, %v421
  %423 = vmatmul.f32.gmra.mxu0 %v125
  %v424 = vpop.f32.mrf.mxu0
  %v425 = vadd.f32 0.0, %v424
  %426 = vmatmul.f32.gmra.mxu0 %v131
  %v427 = vpop.f32.mrf.mxu0
  %v428 = vadd.f32 0.0, %v427
  %429 = vmatmul.f32.gmra.mxu0 %v137
  %v430 = vpop.f32.mrf.mxu0
  %v431 = vadd.f32 0.0, %v430
  %432 = vmatmul.f32.gmra.mxu0 %v143
  %v433 = vpop.f32.mrf.mxu0
  %v434 = vadd.f32 0.0, %v433
  %435 = vmatmul.f32.gmra.mxu0 %v149
  %v436 = vpop.f32.mrf.mxu0
  %v437 = vadd.f32 0.0, %v436
  %438 = vmatmul.f32.gmra.mxu0 %v155
  %v439 = vpop.f32.mrf.mxu0
  %v440 = vadd.f32 0.0, %v439
  %441 = vdwg.mxu0
  %442 = vmatpush.msra.mxu0 %v223
  %443 = vmatpush.msra.mxu0 %v221
  %444 = vmatpush.msra.mxu0 %v219
  %445 = vmatpush.msra.mxu0 %v217
  %446 = vmatpush.msra.mxu0 %v215
  %447 = vmatpush.msra.mxu0 %v213
  %448 = vmatpush.msra.mxu0 %v211
  %449 = vmatpush.msra.mxu0 %v209
  %450 = vmatpush.msra.mxu0 %v207
  %451 = vmatpush.msra.mxu0 %v205
  %452 = vmatpush.msra.mxu0 %v203
  %453 = vmatpush.msra.mxu0 %v201
  %454 = vmatpush.msra.mxu0 %v199
  %455 = vmatpush.msra.mxu0 %v197
  %456 = vmatpush.msra.mxu0 %v195
  %457 = vmatpush.msra.mxu0 %v193
  %458 = vmatmul.f32.gmra.mxu0 %v18
  %v459 = vpop.f32.mrf.mxu0
  %v460 = vadd.f32 %v371, %v459
  %461 = vmatmul.f32.gmra.mxu0 %v24
  %v462 = vpop.f32.mrf.mxu0
  %v463 = vadd.f32 %v374, %v462
  %464 = vmatmul.f32.gmra.mxu0 %v30
  %v465 = vpop.f32.mrf.mxu0
  %v466 = vadd.f32 %v377, %v465
  %467 = vmatmul.f32.gmra.mxu0 %v36
  %v468 = vpop.f32.mrf.mxu0
  %v469 = vadd.f32 %v380, %v468
  %470 = vmatmul.f32.gmra.mxu0 %v42
  %v471 = vpop.f32.mrf.mxu0
  %v472 = vadd.f32 %v383, %v471
  %473 = vmatmul.f32.gmra.mxu0 %v48
  %v474 = vpop.f32.mrf.mxu0
  %v475 = vadd.f32 %v386, %v474
  %476 = vmatmul.f32.gmra.mxu0 %v54
  %v477 = vpop.f32.mrf.mxu0
  %v478 = vadd.f32 %v389, %v477
  %479 = vmatmul.f32.gmra.mxu0 %v60
  %v480 = vpop.f32.mrf.mxu0
  %v481 = vadd.f32 %v392, %v480
  %482 = vmatmul.f32.gmra.mxu0 %v66
  %v483 = vpop.f32.mrf.mxu0
  %v484 = vadd.f32 %v395, %v483
  %485 = vmatmul.f32.gmra.mxu0 %v72
  %v486 = vpop.f32.mrf.mxu0
  %v487 = vadd.f32 %v398, %v486
  %488 = vmatmul.f32.gmra.mxu0 %v78
  %v489 = vpop.f32.mrf.mxu0
  %v490 = vadd.f32 %v401, %v489
  %491 = vmatmul.f32.gmra.mxu0 %v84
  %v492 = vpop.f32.mrf.mxu0
  %v493 = vadd.f32 %v404, %v492
  %494 = vmatmul.f32.gmra.mxu0 %v90
  %v495 = vpop.f32.mrf.mxu0
  %v496 = vadd.f32 %v407, %v495
  %497 = vmatmul.f32.gmra.mxu0 %v96
  %v498 = vpop.f32.mrf.mxu0
  %v499 = vadd.f32 %v410, %v498
  %500 = vmatmul.f32.gmra.mxu0 %v102
  %v501 = vpop.f32.mrf.mxu0
  %v502 = vadd.f32 %v413, %v501
  %503 = vmatmul.f32.gmra.mxu0 %v108
  %v504 = vpop.f32.mrf.mxu0
  %v505 = vadd.f32 %v416, %v504
  %506 = vmatmul.f32.gmra.mxu0 %v114
  %v507 = vpop.f32.mrf.mxu0
  %v508 = vadd.f32 %v419, %v507
  %509 = vmatmul.f32.gmra.mxu0 %v120
  %v510 = vpop.f32.mrf.mxu0
  %v511 = vadd.f32 %v422, %v510
  %512 = vmatmul.f32.gmra.mxu0 %v126
  %v513 = vpop.f32.mrf.mxu0
  %v514 = vadd.f32 %v425, %v513
  %515 = vmatmul.f32.gmra.mxu0 %v132
  %v516 = vpop.f32.mrf.mxu0
  %v517 = vadd.f32 %v428, %v516
  %518 = vmatmul.f32.gmra.mxu0 %v138
  %v519 = vpop.f32.mrf.mxu0
  %v520 = vadd.f32 %v431, %v519
  %521 = vmatmul.f32.gmra.mxu0 %v144
  %v522 = vpop.f32.mrf.mxu0
  %v523 = vadd.f32 %v434, %v522
  %524 = vmatmul.f32.gmra.mxu0 %v150
  %v525 = vpop.f32.mrf.mxu0
  %v526 = vadd.f32 %v437, %v525
  %527 = vmatmul.f32.gmra.mxu0 %v156
  %v528 = vpop.f32.mrf.mxu0
  %v529 = vadd.f32 %v440, %v528
  %530 = vdwg.mxu0
  %531 = vmatpush.msra.mxu0 %v255
  %532 = vmatpush.msra.mxu0 %v253
  %533 = vmatpush.msra.mxu0 %v251
  %534 = vmatpush.msra.mxu0 %v249
  %535 = vmatpush.msra.mxu0 %v247
  %536 = vmatpush.msra.mxu0 %v245
  %537 = vmatpush.msra.mxu0 %v243
  %538 = vmatpush.msra.mxu0 %v241
  %539 = vmatpush.msra.mxu0 %v239
  %540 = vmatpush.msra.mxu0 %v237
  %541 = vmatpush.msra.mxu0 %v235
  %542 = vmatpush.msra.mxu0 %v233
  %543 = vmatpush.msra.mxu0 %v231
  %544 = vmatpush.msra.mxu0 %v229
  %545 = vmatpush.msra.mxu0 %v227
  %546 = vmatpush.msra.mxu0 %v225
  %547 = vmatmul.f32.gmra.mxu0 %v19
  %v548 = vpop.f32.mrf.mxu0
  %v549 = vadd.f32 %v460, %v548
  %550 = vmatmul.f32.gmra.mxu0 %v25
  %v551 = vpop.f32.mrf.mxu0
  %v552 = vadd.f32 %v463, %v551
  %553 = vmatmul.f32.gmra.mxu0 %v31
  %v554 = vpop.f32.mrf.mxu0
  %v555 = vadd.f32 %v466, %v554
  %556 = vmatmul.f32.gmra.mxu0 %v37
  %v557 = vpop.f32.mrf.mxu0
  %v558 = vadd.f32 %v469, %v557
  %559 = vmatmul.f32.gmra.mxu0 %v43
  %v560 = vpop.f32.mrf.mxu0
  %v561 = vadd.f32 %v472, %v560
  %562 = vmatmul.f32.gmra.mxu0 %v49
  %v563 = vpop.f32.mrf.mxu0
  %v564 = vadd.f32 %v475, %v563
  %565 = vmatmul.f32.gmra.mxu0 %v55
  %v566 = vpop.f32.mrf.mxu0
  %v567 = vadd.f32 %v478, %v566
  %568 = vmatmul.f32.gmra.mxu0 %v61
  %v569 = vpop.f32.mrf.mxu0
  %v570 = vadd.f32 %v481, %v569
  %571 = vmatmul.f32.gmra.mxu0 %v67
  %v572 = vpop.f32.mrf.mxu0
  %v573 = vadd.f32 %v484, %v572
  %574 = vmatmul.f32.gmra.mxu0 %v73
  %v575 = vpop.f32.mrf.mxu0
  %v576 = vadd.f32 %v487, %v575
  %577 = vmatmul.f32.gmra.mxu0 %v79
  %v578 = vpop.f32.mrf.mxu0
  %v579 = vadd.f32 %v490, %v578
  %580 = vmatmul.f32.gmra.mxu0 %v85
  %v581 = vpop.f32.mrf.mxu0
  %v582 = vadd.f32 %v493, %v581
  %583 = vmatmul.f32.gmra.mxu0 %v91
  %v584 = vpop.f32.mrf.mxu0
  %v585 = vadd.f32 %v496, %v584
  %586 = vmatmul.f32.gmra.mxu0 %v97
  %v587 = vpop.f32.mrf.mxu0
  %v588 = vadd.f32 %v499, %v587
  %589 = vmatmul.f32.gmra.mxu0 %v103
  %v590 = vpop.f32.mrf.mxu0
  %v591 = vadd.f32 %v502, %v590
  %592 = vmatmul.f32.gmra.mxu0 %v109
  %v593 = vpop.f32.mrf.mxu0
  %v594 = vadd.f32 %v505, %v593
  %595 = vmatmul.f32.gmra.mxu0 %v115
  %v596 = vpop.f32.mrf.mxu0
  %v597 = vadd.f32 %v508, %v596
  %598 = vmatmul.f32.gmra.mxu0 %v121
  %v599 = vpop.f32.mrf.mxu0
  %v600 = vadd.f32 %v511, %v599
  %601 = vmatmul.f32.gmra.mxu0 %v127
  %v602 = vpop.f32.mrf.mxu0
  %v603 = vadd.f32 %v514, %v602
  %604 = vmatmul.f32.gmra.mxu0 %v133
  %v605 = vpop.f32.mrf.mxu0
  %v606 = vadd.f32 %v517, %v605
  %607 = vmatmul.f32.gmra.mxu0 %v139
  %v608 = vpop.f32.mrf.mxu0
  %v609 = vadd.f32 %v520, %v608
  %610 = vmatmul.f32.gmra.mxu0 %v145
  %v611 = vpop.f32.mrf.mxu0
  %v612 = vadd.f32 %v523, %v611
  %613 = vmatmul.f32.gmra.mxu0 %v151
  %v614 = vpop.f32.mrf.mxu0
  %v615 = vadd.f32 %v526, %v614
  %616 = vmatmul.f32.gmra.mxu0 %v157
  %v617 = vpop.f32.mrf.mxu0
  %v618 = vadd.f32 %v529, %v617
  %619 = vdwg.mxu0
  %620 = vmatpush.msra.mxu0 %v287
  %621 = vmatpush.msra.mxu0 %v285
  %622 = vmatpush.msra.mxu0 %v283
  %623 = vmatpush.msra.mxu0 %v281
  %624 = vmatpush.msra.mxu0 %v279
  %625 = vmatpush.msra.mxu0 %v277
  %626 = vmatpush.msra.mxu0 %v275
  %627 = vmatpush.msra.mxu0 %v273
  %628 = vmatpush.msra.mxu0 %v271
  %629 = vmatpush.msra.mxu0 %v269
  %630 = vmatpush.msra.mxu0 %v267
  %631 = vmatpush.msra.mxu0 %v265
  %632 = vmatpush.msra.mxu0 %v263
  %633 = vmatpush.msra.mxu0 %v261
  %634 = vmatpush.msra.mxu0 %v259
  %635 = vmatpush.msra.mxu0 %v257
  %636 = vmatmul.f32.gmra.mxu0 %v20
  %v637 = vpop.f32.mrf.mxu0
  %v638 = vadd.f32 %v549, %v637
  %639 = vmatmul.f32.gmra.mxu0 %v26
  %v640 = vpop.f32.mrf.mxu0
  %v641 = vadd.f32 %v552, %v640
  %642 = vmatmul.f32.gmra.mxu0 %v32
  %v643 = vpop.f32.mrf.mxu0
  %v644 = vadd.f32 %v555, %v643
  %645 = vmatmul.f32.gmra.mxu0 %v38
  %v646 = vpop.f32.mrf.mxu0
  %v647 = vadd.f32 %v558, %v646
  %648 = vmatmul.f32.gmra.mxu0 %v44
  %v649 = vpop.f32.mrf.mxu0
  %v650 = vadd.f32 %v561, %v649
  %651 = vmatmul.f32.gmra.mxu0 %v50
  %v652 = vpop.f32.mrf.mxu0
  %v653 = vadd.f32 %v564, %v652
  %654 = vmatmul.f32.gmra.mxu0 %v56
  %v655 = vpop.f32.mrf.mxu0
  %v656 = vadd.f32 %v567, %v655
  %657 = vmatmul.f32.gmra.mxu0 %v62
  %v658 = vpop.f32.mrf.mxu0
  %v659 = vadd.f32 %v570, %v658
  %660 = vmatmul.f32.gmra.mxu0 %v68
  %v661 = vpop.f32.mrf.mxu0
  %v662 = vadd.f32 %v573, %v661
  %663 = vmatmul.f32.gmra.mxu0 %v74
  %v664 = vpop.f32.mrf.mxu0
  %v665 = vadd.f32 %v576, %v664
  %666 = vmatmul.f32.gmra.mxu0 %v80
  %v667 = vpop.f32.mrf.mxu0
  %v668 = vadd.f32 %v579, %v667
  %669 = vmatmul.f32.gmra.mxu0 %v86
  %v670 = vpop.f32.mrf.mxu0
  %v671 = vadd.f32 %v582, %v670
  %672 = vmatmul.f32.gmra.mxu0 %v92
  %v673 = vpop.f32.mrf.mxu0
  %v674 = vadd.f32 %v585, %v673
  %675 = vmatmul.f32.gmra.mxu0 %v98
  %v676 = vpop.f32.mrf.mxu0
  %v677 = vadd.f32 %v588, %v676
  %678 = vmatmul.f32.gmra.mxu0 %v104
  %v679 = vpop.f32.mrf.mxu0
  %v680 = vadd.f32 %v591, %v679
  %681 = vmatmul.f32.gmra.mxu0 %v110
  %v682 = vpop.f32.mrf.mxu0
  %v683 = vadd.f32 %v594, %v682
  %684 = vmatmul.f32.gmra.mxu0 %v116
  %v685 = vpop.f32.mrf.mxu0
  %v686 = vadd.f32 %v597, %v685
  %687 = vmatmul.f32.gmra.mxu0 %v122
  %v688 = vpop.f32.mrf.mxu0
  %v689 = vadd.f32 %v600, %v688
  %690 = vmatmul.f32.gmra.mxu0 %v128
  %v691 = vpop.f32.mrf.mxu0
  %v692 = vadd.f32 %v603, %v691
  %693 = vmatmul.f32.gmra.mxu0 %v134
  %v694 = vpop.f32.mrf.mxu0
  %v695 = vadd.f32 %v606, %v694
  %696 = vmatmul.f32.gmra.mxu0 %v140
  %v697 = vpop.f32.mrf.mxu0
  %v698 = vadd.f32 %v609, %v697
  %699 = vmatmul.f32.gmra.mxu0 %v146
  %v700 = vpop.f32.mrf.mxu0
  %v701 = vadd.f32 %v612, %v700
  %702 = vmatmul.f32.gmra.mxu0 %v152
  %v703 = vpop.f32.mrf.mxu0
  %v704 = vadd.f32 %v615, %v703
  %705 = vmatmul.f32.gmra.mxu0 %v158
  %v706 = vpop.f32.mrf.mxu0
  %v707 = vadd.f32 %v618, %v706
  %708 = vdwg.mxu0
  %709 = vmatpush.msra.mxu0 %v319
  %710 = vmatpush.msra.mxu0 %v317
  %711 = vmatpush.msra.mxu0 %v315
  %712 = vmatpush.msra.mxu0 %v313
  %713 = vmatpush.msra.mxu0 %v311
  %714 = vmatpush.msra.mxu0 %v309
  %715 = vmatpush.msra.mxu0 %v307
  %716 = vmatpush.msra.mxu0 %v305
  %717 = vmatpush.msra.mxu0 %v303
  %718 = vmatpush.msra.mxu0 %v301
  %719 = vmatpush.msra.mxu0 %v299
  %720 = vmatpush.msra.mxu0 %v297
  %721 = vmatpush.msra.mxu0 %v295
  %722 = vmatpush.msra.mxu0 %v293
  %723 = vmatpush.msra.mxu0 %v291
  %724 = vmatpush.msra.mxu0 %v289
  %725 = vmatmul.f32.gmra.mxu0 %v21
  %v726 = vpop.f32.mrf.mxu0
  %v727 = vadd.f32 %v638, %v726
  %728 = vmatmul.f32.gmra.mxu0 %v27
  %v729 = vpop.f32.mrf.mxu0
  %v730 = vadd.f32 %v641, %v729
  %731 = vmatmul.f32.gmra.mxu0 %v33
  %v732 = vpop.f32.mrf.mxu0
  %v733 = vadd.f32 %v644, %v732
  %734 = vmatmul.f32.gmra.mxu0 %v39
  %v735 = vpop.f32.mrf.mxu0
  %v736 = vadd.f32 %v647, %v735
  %737 = vmatmul.f32.gmra.mxu0 %v45
  %v738 = vpop.f32.mrf.mxu0
  %v739 = vadd.f32 %v650, %v738
  %740 = vmatmul.f32.gmra.mxu0 %v51
  %v741 = vpop.f32.mrf.mxu0
  %v742 = vadd.f32 %v653, %v741
  %743 = vmatmul.f32.gmra.mxu0 %v57
  %v744 = vpop.f32.mrf.mxu0
  %v745 = vadd.f32 %v656, %v744
  %746 = vmatmul.f32.gmra.mxu0 %v63
  %v747 = vpop.f32.mrf.mxu0
  %v748 = vadd.f32 %v659, %v747
  %749 = vmatmul.f32.gmra.mxu0 %v69
  %v750 = vpop.f32.mrf.mxu0
  %v751 = vadd.f32 %v662, %v750
  %752 = vmatmul.f32.gmra.mxu0 %v75
  %v753 = vpop.f32.mrf.mxu0
  %v754 = vadd.f32 %v665, %v753
  %755 = vmatmul.f32.gmra.mxu0 %v81
  %v756 = vpop.f32.mrf.mxu0
  %v757 = vadd.f32 %v668, %v756
  %758 = vmatmul.f32.gmra.mxu0 %v87
  %v759 = vpop.f32.mrf.mxu0
  %v760 = vadd.f32 %v671, %v759
  %761 = vmatmul.f32.gmra.mxu0 %v93
  %v762 = vpop.f32.mrf.mxu0
  %v763 = vadd.f32 %v674, %v762
  %764 = vmatmul.f32.gmra.mxu0 %v99
  %v765 = vpop.f32.mrf.mxu0
  %v766 = vadd.f32 %v677, %v765
  %767 = vmatmul.f32.gmra.mxu0 %v105
  %v768 = vpop.f32.mrf.mxu0
  %v769 = vadd.f32 %v680, %v768
  %770 = vmatmul.f32.gmra.mxu0 %v111
  %v771 = vpop.f32.mrf.mxu0
  %v772 = vadd.f32 %v683, %v771
  %773 = vmatmul.f32.gmra.mxu0 %v117
  %v774 = vpop.f32.mrf.mxu0
  %v775 = vadd.f32 %v686, %v774
  %776 = vmatmul.f32.gmra.mxu0 %v123
  %v777 = vpop.f32.mrf.mxu0
  %v778 = vadd.f32 %v689, %v777
  %779 = vmatmul.f32.gmra.mxu0 %v129
  %v780 = vpop.f32.mrf.mxu0
  %v781 = vadd.f32 %v692, %v780
  %782 = vmatmul.f32.gmra.mxu0 %v135
  %v783 = vpop.f32.mrf.mxu0
  %v784 = vadd.f32 %v695, %v783
  %785 = vmatmul.f32.gmra.mxu0 %v141
  %v786 = vpop.f32.mrf.mxu0
  %v787 = vadd.f32 %v698, %v786
  %788 = vmatmul.f32.gmra.mxu0 %v147
  %v789 = vpop.f32.mrf.mxu0
  %v790 = vadd.f32 %v701, %v789
  %791 = vmatmul.f32.gmra.mxu0 %v153
  %v792 = vpop.f32.mrf.mxu0
  %v793 = vadd.f32 %v704, %v792
  %794 = vmatmul.f32.gmra.mxu0 %v159
  %v795 = vpop.f32.mrf.mxu0
  %v796 = vadd.f32 %v707, %v795
  %797 = vdwg.mxu0
  %798 = vmatpush.msra.mxu0 %v351
  %799 = vmatpush.msra.mxu0 %v349
  %800 = vmatpush.msra.mxu0 %v347
  %801 = vmatpush.msra.mxu0 %v345
  %802 = vmatpush.msra.mxu0 %v343
  %803 = vmatpush.msra.mxu0 %v341
  %804 = vmatpush.msra.mxu0 %v339
  %805 = vmatpush.msra.mxu0 %v337
  %806 = vmatpush.msra.mxu0 %v335
  %807 = vmatpush.msra.mxu0 %v333
  %808 = vmatpush.msra.mxu0 %v331
  %809 = vmatpush.msra.mxu0 %v329
  %810 = vmatpush.msra.mxu0 %v327
  %811 = vmatpush.msra.mxu0 %v325
  %812 = vmatpush.msra.mxu0 %v323
  %813 = vmatpush.msra.mxu0 %v321
  %814 = vmatmul.f32.gmra.mxu0 %v22
  %v815 = vpop.f32.mrf.mxu0
  %v816 = vadd.f32 %v727, %v815
  %817 = vmatmul.f32.gmra.mxu0 %v28
  %v818 = vpop.f32.mrf.mxu0
  %v819 = vadd.f32 %v730, %v818
  %820 = vmatmul.f32.gmra.mxu0 %v34
  %v821 = vpop.f32.mrf.mxu0
  %v822 = vadd.f32 %v733, %v821
  %823 = vmatmul.f32.gmra.mxu0 %v40
  %v824 = vpop.f32.mrf.mxu0
  %v825 = vadd.f32 %v736, %v824
  %826 = vmatmul.f32.gmra.mxu0 %v46
  %v827 = vpop.f32.mrf.mxu0
  %v828 = vadd.f32 %v739, %v827
  %829 = vmatmul.f32.gmra.mxu0 %v52
  %v830 = vpop.f32.mrf.mxu0
  %v831 = vadd.f32 %v742, %v830
  %832 = vmatmul.f32.gmra.mxu0 %v58
  %v833 = vpop.f32.mrf.mxu0
  %v834 = vadd.f32 %v745, %v833
  %835 = vmatmul.f32.gmra.mxu0 %v64
  %v836 = vpop.f32.mrf.mxu0
  %v837 = vadd.f32 %v748, %v836
  %838 = vmatmul.f32.gmra.mxu0 %v70
  %v839 = vpop.f32.mrf.mxu0
  %v840 = vadd.f32 %v751, %v839
  %841 = vmatmul.f32.gmra.mxu0 %v76
  %v842 = vpop.f32.mrf.mxu0
  %v843 = vadd.f32 %v754, %v842
  %844 = vmatmul.f32.gmra.mxu0 %v82
  %v845 = vpop.f32.mrf.mxu0
  %v846 = vadd.f32 %v757, %v845
  %847 = vmatmul.f32.gmra.mxu0 %v88
  %v848 = vpop.f32.mrf.mxu0
  %v849 = vadd.f32 %v760, %v848
  %850 = vmatmul.f32.gmra.mxu0 %v94
  %v851 = vpop.f32.mrf.mxu0
  %v852 = vadd.f32 %v763, %v851
  %853 = vmatmul.f32.gmra.mxu0 %v100
  %v854 = vpop.f32.mrf.mxu0
  %v855 = vadd.f32 %v766, %v854
  %856 = vmatmul.f32.gmra.mxu0 %v106
  %v857 = vpop.f32.mrf.mxu0
  %v858 = vadd.f32 %v769, %v857
  %859 = vmatmul.f32.gmra.mxu0 %v112
  %v860 = vpop.f32.mrf.mxu0
  %v861 = vadd.f32 %v772, %v860
  %862 = vmatmul.f32.gmra.mxu0 %v118
  %v863 = vpop.f32.mrf.mxu0
  %v864 = vadd.f32 %v775, %v863
  %865 = vmatmul.f32.gmra.mxu0 %v124
  %v866 = vpop.f32.mrf.mxu0
  %v867 = vadd.f32 %v778, %v866
  %868 = vmatmul.f32.gmra.mxu0 %v130
  %v869 = vpop.f32.mrf.mxu0
  %v870 = vadd.f32 %v781, %v869
  %871 = vmatmul.f32.gmra.mxu0 %v136
  %v872 = vpop.f32.mrf.mxu0
  %v873 = vadd.f32 %v784, %v872
  %874 = vmatmul.f32.gmra.mxu0 %v142
  %v875 = vpop.f32.mrf.mxu0
  %v876 = vadd.f32 %v787, %v875
  %877 = vmatmul.f32.gmra.mxu0 %v148
  %v878 = vpop.f32.mrf.mxu0
  %v879 = vadd.f32 %v790, %v878
  %880 = vmatmul.f32.gmra.mxu0 %v154
  %v881 = vpop.f32.mrf.mxu0
  %v882 = vadd.f32 %v793, %v881
  %883 = vmatmul.f32.gmra.mxu0 %v160
  %v884 = vpop.f32.mrf.mxu0
  %v885 = vadd.f32 %v796, %v884
  %886 = vdwg.mxu0
  %887 = vmatpush.msra.mxu0 %v192
  %888 = vmatpush.msra.mxu0 %v190
  %889 = vmatpush.msra.mxu0 %v188
  %890 = vmatpush.msra.mxu0 %v186
  %891 = vmatpush.msra.mxu0 %v184
  %892 = vmatpush.msra.mxu0 %v182
  %893 = vmatpush.msra.mxu0 %v180
  %894 = vmatpush.msra.mxu0 %v178
  %895 = vmatpush.msra.mxu0 %v176
  %896 = vmatpush.msra.mxu0 %v174
  %897 = vmatpush.msra.mxu0 %v172
  %898 = vmatpush.msra.mxu0 %v170
  %899 = vmatpush.msra.mxu0 %v168
  %900 = vmatpush.msra.mxu0 %v166
  %901 = vmatpush.msra.mxu0 %v164
  %902 = vmatpush.msra.mxu0 %v162
  %903 = vmatmul.f32.gmra.mxu0 %v17
  %v904 = vpop.f32.mrf.mxu0
  %v905 = vadd.f32 0.0, %v904
  %906 = vmatmul.f32.gmra.mxu0 %v23
  %v907 = vpop.f32.mrf.mxu0
  %v908 = vadd.f32 0.0, %v907
  %909 = vmatmul.f32.gmra.mxu0 %v29
  %v910 = vpop.f32.mrf.mxu0
  %v911 = vadd.f32 0.0, %v910
  %912 = vmatmul.f32.gmra.mxu0 %v35
  %v913 = vpop.f32.mrf.mxu0
  %v914 = vadd.f32 0.0, %v913
  %915 = vmatmul.f32.gmra.mxu0 %v41
  %v916 = vpop.f32.mrf.mxu0
  %v917 = vadd.f32 0.0, %v916
  %918 = vmatmul.f32.gmra.mxu0 %v47
  %v919 = vpop.f32.mrf.mxu0
  %v920 = vadd.f32 0.0, %v919
  %921 = vmatmul.f32.gmra.mxu0 %v53
  %v922 = vpop.f32.mrf.mxu0
  %v923 = vadd.f32 0.0, %v922
  %924 = vmatmul.f32.gmra.mxu0 %v59
  %v925 = vpop.f32.mrf.mxu0
  %v926 = vadd.f32 0.0, %v925
  %927 = vmatmul.f32.gmra.mxu0 %v65
  %v928 = vpop.f32.mrf.mxu0
  %v929 = vadd.f32 0.0, %v928
  %930 = vmatmul.f32.gmra.mxu0 %v71
  %v931 = vpop.f32.mrf.mxu0
  %v932 = vadd.f32 0.0, %v931
  %933 = vmatmul.f32.gmra.mxu0 %v77
  %v934 = vpop.f32.mrf.mxu0
  %v935 = vadd.f32 0.0, %v934
  %936 = vmatmul.f32.gmra.mxu0 %v83
  %v937 = vpop.f32.mrf.mxu0
  %v938 = vadd.f32 0.0, %v937
  %939 = vmatmul.f32.gmra.mxu0 %v89
  %v940 = vpop.f32.mrf.mxu0
  %v941 = vadd.f32 0.0, %v940
  %942 = vmatmul.f32.gmra.mxu0 %v95
  %v943 = vpop.f32.mrf.mxu0
  %v944 = vadd.f32 0.0, %v943
  %945 = vmatmul.f32.gmra.mxu0 %v101
  %v946 = vpop.f32.mrf.mxu0
  %v947 = vadd.f32 0.0, %v946
  %948 = vmatmul.f32.gmra.mxu0 %v107
  %v949 = vpop.f32.mrf.mxu0
  %v950 = vadd.f32 0.0, %v949
  %951 = vmatmul.f32.gmra.mxu0 %v113
  %v952 = vpop.f32.mrf.mxu0
  %v953 = vadd.f32 0.0, %v952
  %954 = vmatmul.f32.gmra.mxu0 %v119
  %v955 = vpop.f32.mrf.mxu0
  %v956 = vadd.f32 0.0, %v955
  %957 = vmatmul.f32.gmra.mxu0 %v125
  %v958 = vpop.f32.mrf.mxu0
  %v959 = vadd.f32 0.0, %v958
  %960 = vmatmul.f32.gmra.mxu0 %v131
  %v961 = vpop.f32.mrf.mxu0
  %v962 = vadd.f32 0.0, %v961
  %963 = vmatmul.f32.gmra.mxu0 %v137
  %v964 = vpop.f32.mrf.mxu0
  %v965 = vadd.f32 0.0, %v964
  %966 = vmatmul.f32.gmra.mxu0 %v143
  %v967 = vpop.f32.mrf.mxu0
  %v968 = vadd.f32 0.0, %v967
  %969 = vmatmul.f32.gmra.mxu0 %v149
  %v970 = vpop.f32.mrf.mxu0
  %v971 = vadd.f32 0.0, %v970
  %972 = vmatmul.f32.gmra.mxu0 %v155
  %v973 = vpop.f32.mrf.mxu0
  %v974 = vadd.f32 0.0, %v973
  %975 = vdwg.mxu0
  %976 = vmatpush.msra.mxu0 %v224
  %977 = vmatpush.msra.mxu0 %v222
  %978 = vmatpush.msra.mxu0 %v220
  %979 = vmatpush.msra.mxu0 %v218
  %980 = vmatpush.msra.mxu0 %v216
  %981 = vmatpush.msra.mxu0 %v214
  %982 = vmatpush.msra.mxu0 %v212
  %983 = vmatpush.msra.mxu0 %v210
  %984 = vmatpush.msra.mxu0 %v208
  %985 = vmatpush.msra.mxu0 %v206
  %986 = vmatpush.msra.mxu0 %v204
  %987 = vmatpush.msra.mxu0 %v202
  %988 = vmatpush.msra.mxu0 %v200
  %989 = vmatpush.msra.mxu0 %v198
  %990 = vmatpush.msra.mxu0 %v196
  %991 = vmatpush.msra.mxu0 %v194
  %992 = vmatmul.f32.gmra.mxu0 %v18
  %v993 = vpop.f32.mrf.mxu0
  %v994 = vadd.f32 %v905, %v993
  %995 = vmatmul.f32.gmra.mxu0 %v24
  %v996 = vpop.f32.mrf.mxu0
  %v997 = vadd.f32 %v908, %v996
  %998 = vmatmul.f32.gmra.mxu0 %v30
  %v999 = vpop.f32.mrf.mxu0
  %v1000 = vadd.f32 %v911, %v999
  %1001 = vmatmul.f32.gmra.mxu0 %v36
  %v1002 = vpop.f32.mrf.mxu0
  %v1003 = vadd.f32 %v914, %v1002
  %1004 = vmatmul.f32.gmra.mxu0 %v42
  %v1005 = vpop.f32.mrf.mxu0
  %v1006 = vadd.f32 %v917, %v1005
  %1007 = vmatmul.f32.gmra.mxu0 %v48
  %v1008 = vpop.f32.mrf.mxu0
  %v1009 = vadd.f32 %v920, %v1008
  %1010 = vmatmul.f32.gmra.mxu0 %v54
  %v1011 = vpop.f32.mrf.mxu0
  %v1012 = vadd.f32 %v923, %v1011
  %1013 = vmatmul.f32.gmra.mxu0 %v60
  %v1014 = vpop.f32.mrf.mxu0
  %v1015 = vadd.f32 %v926, %v1014
  %1016 = vmatmul.f32.gmra.mxu0 %v66
  %v1017 = vpop.f32.mrf.mxu0
  %v1018 = vadd.f32 %v929, %v1017
  %1019 = vmatmul.f32.gmra.mxu0 %v72
  %v1020 = vpop.f32.mrf.mxu0
  %v1021 = vadd.f32 %v932, %v1020
  %1022 = vmatmul.f32.gmra.mxu0 %v78
  %v1023 = vpop.f32.mrf.mxu0
  %v1024 = vadd.f32 %v935, %v1023
  %1025 = vmatmul.f32.gmra.mxu0 %v84
  %v1026 = vpop.f32.mrf.mxu0
  %v1027 = vadd.f32 %v938, %v1026
  %1028 = vmatmul.f32.gmra.mxu0 %v90
  %v1029 = vpop.f32.mrf.mxu0
  %v1030 = vadd.f32 %v941, %v1029
  %1031 = vmatmul.f32.gmra.mxu0 %v96
  %v1032 = vpop.f32.mrf.mxu0
  %v1033 = vadd.f32 %v944, %v1032
  %1034 = vmatmul.f32.gmra.mxu0 %v102
  %v1035 = vpop.f32.mrf.mxu0
  %v1036 = vadd.f32 %v947, %v1035
  %1037 = vmatmul.f32.gmra.mxu0 %v108
  %v1038 = vpop.f32.mrf.mxu0
  %v1039 = vadd.f32 %v950, %v1038
  %1040 = vmatmul.f32.gmra.mxu0 %v114
  %v1041 = vpop.f32.mrf.mxu0
  %v1042 = vadd.f32 %v953, %v1041
  %1043 = vmatmul.f32.gmra.mxu0 %v120
  %v1044 = vpop.f32.mrf.mxu0
  %v1045 = vadd.f32 %v956, %v1044
  %1046 = vmatmul.f32.gmra.mxu0 %v126
  %v1047 = vpop.f32.mrf.mxu0
  %v1048 = vadd.f32 %v959, %v1047
  %1049 = vmatmul.f32.gmra.mxu0 %v132
  %v1050 = vpop.f32.mrf.mxu0
  %v1051 = vadd.f32 %v962, %v1050
  %1052 = vmatmul.f32.gmra.mxu0 %v138
  %v1053 = vpop.f32.mrf.mxu0
  %v1054 = vadd.f32 %v965, %v1053
  %1055 = vmatmul.f32.gmra.mxu0 %v144
  %v1056 = vpop.f32.mrf.mxu0
  %v1057 = vadd.f32 %v968, %v1056
  %1058 = vmatmul.f32.gmra.mxu0 %v150
  %v1059 = vpop.f32.mrf.mxu0
  %v1060 = vadd.f32 %v971, %v1059
  %1061 = vmatmul.f32.gmra.mxu0 %v156
  %v1062 = vpop.f32.mrf.mxu0
  %v1063 = vadd.f32 %v974, %v1062
  %1064 = vdwg.mxu0
  %1065 = vmatpush.msra.mxu0 %v256
  %1066 = vmatpush.msra.mxu0 %v254
  %1067 = vmatpush.msra.mxu0 %v252
  %1068 = vmatpush.msra.mxu0 %v250
  %1069 = vmatpush.msra.mxu0 %v248
  %1070 = vmatpush.msra.mxu0 %v246
  %1071 = vmatpush.msra.mxu0 %v244
  %1072 = vmatpush.msra.mxu0 %v242
  %1073 = vmatpush.msra.mxu0 %v240
  %1074 = vmatpush.msra.mxu0 %v238
  %1075 = vmatpush.msra.mxu0 %v236
  %1076 = vmatpush.msra.mxu0 %v234
  %1077 = vmatpush.msra.mxu0 %v232
  %1078 = vmatpush.msra.mxu0 %v230
  %1079 = vmatpush.msra.mxu0 %v228
  %1080 = vmatpush.msra.mxu0 %v226
  %1081 = vmatmul.f32.gmra.mxu0 %v19
  %v1082 = vpop.f32.mrf.mxu0
  %v1083 = vadd.f32 %v994, %v1082
  %1084 = vmatmul.f32.gmra.mxu0 %v25
  %v1085 = vpop.f32.mrf.mxu0
  %v1086 = vadd.f32 %v997, %v1085
  %1087 = vmatmul.f32.gmra.mxu0 %v31
  %v1088 = vpop.f32.mrf.mxu0
  %v1089 = vadd.f32 %v1000, %v1088
  %1090 = vmatmul.f32.gmra.mxu0 %v37
  %v1091 = vpop.f32.mrf.mxu0
  %v1092 = vadd.f32 %v1003, %v1091
  %1093 = vmatmul.f32.gmra.mxu0 %v43
  %v1094 = vpop.f32.mrf.mxu0
  %v1095 = vadd.f32 %v1006, %v1094
  %1096 = vmatmul.f32.gmra.mxu0 %v49
  %v1097 = vpop.f32.mrf.mxu0
  %v1098 = vadd.f32 %v1009, %v1097
  %1099 = vmatmul.f32.gmra.mxu0 %v55
  %v1100 = vpop.f32.mrf.mxu0
  %v1101 = vadd.f32 %v1012, %v1100
  %1102 = vmatmul.f32.gmra.mxu0 %v61
  %v1103 = vpop.f32.mrf.mxu0
  %v1104 = vadd.f32 %v1015, %v1103
  %1105 = vmatmul.f32.gmra.mxu0 %v67
  %v1106 = vpop.f32.mrf.mxu0
  %v1107 = vadd.f32 %v1018, %v1106
  %1108 = vmatmul.f32.gmra.mxu0 %v73
  %v1109 = vpop.f32.mrf.mxu0
  %v1110 = vadd.f32 %v1021, %v1109
  %1111 = vmatmul.f32.gmra.mxu0 %v79
  %v1112 = vpop.f32.mrf.mxu0
  %v1113 = vadd.f32 %v1024, %v1112
  %1114 = vmatmul.f32.gmra.mxu0 %v85
  %v1115 = vpop.f32.mrf.mxu0
  %v1116 = vadd.f32 %v1027, %v1115
  %1117 = vmatmul.f32.gmra.mxu0 %v91
  %v1118 = vpop.f32.mrf.mxu0
  %v1119 = vadd.f32 %v1030, %v1118
  %1120 = vmatmul.f32.gmra.mxu0 %v97
  %v1121 = vpop.f32.mrf.mxu0
  %v1122 = vadd.f32 %v1033, %v1121
  %1123 = vmatmul.f32.gmra.mxu0 %v103
  %v1124 = vpop.f32.mrf.mxu0
  %v1125 = vadd.f32 %v1036, %v1124
  %1126 = vmatmul.f32.gmra.mxu0 %v109
  %v1127 = vpop.f32.mrf.mxu0
  %v1128 = vadd.f32 %v1039, %v1127
  %1129 = vmatmul.f32.gmra.mxu0 %v115
  %v1130 = vpop.f32.mrf.mxu0
  %v1131 = vadd.f32 %v1042, %v1130
  %1132 = vmatmul.f32.gmra.mxu0 %v121
  %v1133 = vpop.f32.mrf.mxu0
  %v1134 = vadd.f32 %v1045, %v1133
  %1135 = vmatmul.f32.gmra.mxu0 %v127
  %v1136 = vpop.f32.mrf.mxu0
  %v1137 = vadd.f32 %v1048, %v1136
  %1138 = vmatmul.f32.gmra.mxu0 %v133
  %v1139 = vpop.f32.mrf.mxu0
  %v1140 = vadd.f32 %v1051, %v1139
  %1141 = vmatmul.f32.gmra.mxu0 %v139
  %v1142 = vpop.f32.mrf.mxu0
  %v1143 = vadd.f32 %v1054, %v1142
  %1144 = vmatmul.f32.gmra.mxu0 %v145
  %v1145 = vpop.f32.mrf.mxu0
  %v1146 = vadd.f32 %v1057, %v1145
  %1147 = vmatmul.f32.gmra.mxu0 %v151
  %v1148 = vpop.f32.mrf.mxu0
  %v1149 = vadd.f32 %v1060, %v1148
  %1150 = vmatmul.f32.gmra.mxu0 %v157
  %v1151 = vpop.f32.mrf.mxu0
  %v1152 = vadd.f32 %v1063, %v1151
  %1153 = vdwg.mxu0
  %1154 = vmatpush.msra.mxu0 %v288
  %1155 = vmatpush.msra.mxu0 %v286
  %1156 = vmatpush.msra.mxu0 %v284
  %1157 = vmatpush.msra.mxu0 %v282
  %1158 = vmatpush.msra.mxu0 %v280
  %1159 = vmatpush.msra.mxu0 %v278
  %1160 = vmatpush.msra.mxu0 %v276
  %1161 = vmatpush.msra.mxu0 %v274
  %1162 = vmatpush.msra.mxu0 %v272
  %1163 = vmatpush.msra.mxu0 %v270
  %1164 = vmatpush.msra.mxu0 %v268
  %1165 = vmatpush.msra.mxu0 %v266
  %1166 = vmatpush.msra.mxu0 %v264
  %1167 = vmatpush.msra.mxu0 %v262
  %1168 = vmatpush.msra.mxu0 %v260
  %1169 = vmatpush.msra.mxu0 %v258
  %1170 = vmatmul.f32.gmra.mxu0 %v20
  %v1171 = vpop.f32.mrf.mxu0
  %v1172 = vadd.f32 %v1083, %v1171
  %1173 = vmatmul.f32.gmra.mxu0 %v26
  %v1174 = vpop.f32.mrf.mxu0
  %v1175 = vadd.f32 %v1086, %v1174
  %1176 = vmatmul.f32.gmra.mxu0 %v32
  %v1177 = vpop.f32.mrf.mxu0
  %v1178 = vadd.f32 %v1089, %v1177
  %1179 = vmatmul.f32.gmra.mxu0 %v38
  %v1180 = vpop.f32.mrf.mxu0
  %v1181 = vadd.f32 %v1092, %v1180
  %1182 = vmatmul.f32.gmra.mxu0 %v44
  %v1183 = vpop.f32.mrf.mxu0
  %v1184 = vadd.f32 %v1095, %v1183
  %1185 = vmatmul.f32.gmra.mxu0 %v50
  %v1186 = vpop.f32.mrf.mxu0
  %v1187 = vadd.f32 %v1098, %v1186
  %1188 = vmatmul.f32.gmra.mxu0 %v56
  %v1189 = vpop.f32.mrf.mxu0
  %v1190 = vadd.f32 %v1101, %v1189
  %1191 = vmatmul.f32.gmra.mxu0 %v62
  %v1192 = vpop.f32.mrf.mxu0
  %v1193 = vadd.f32 %v1104, %v1192
  %1194 = vmatmul.f32.gmra.mxu0 %v68
  %v1195 = vpop.f32.mrf.mxu0
  %v1196 = vadd.f32 %v1107, %v1195
  %1197 = vmatmul.f32.gmra.mxu0 %v74
  %v1198 = vpop.f32.mrf.mxu0
  %v1199 = vadd.f32 %v1110, %v1198
  %1200 = vmatmul.f32.gmra.mxu0 %v80
  %v1201 = vpop.f32.mrf.mxu0
  %v1202 = vadd.f32 %v1113, %v1201
  %1203 = vmatmul.f32.gmra.mxu0 %v86
  %v1204 = vpop.f32.mrf.mxu0
  %v1205 = vadd.f32 %v1116, %v1204
  %1206 = vmatmul.f32.gmra.mxu0 %v92
  %v1207 = vpop.f32.mrf.mxu0
  %v1208 = vadd.f32 %v1119, %v1207
  %1209 = vmatmul.f32.gmra.mxu0 %v98
  %v1210 = vpop.f32.mrf.mxu0
  %v1211 = vadd.f32 %v1122, %v1210
  %1212 = vmatmul.f32.gmra.mxu0 %v104
  %v1213 = vpop.f32.mrf.mxu0
  %v1214 = vadd.f32 %v1125, %v1213
  %1215 = vmatmul.f32.gmra.mxu0 %v110
  %v1216 = vpop.f32.mrf.mxu0
  %v1217 = vadd.f32 %v1128, %v1216
  %1218 = vmatmul.f32.gmra.mxu0 %v116
  %v1219 = vpop.f32.mrf.mxu0
  %v1220 = vadd.f32 %v1131, %v1219
  %1221 = vmatmul.f32.gmra.mxu0 %v122
  %v1222 = vpop.f32.mrf.mxu0
  %v1223 = vadd.f32 %v1134, %v1222
  %1224 = vmatmul.f32.gmra.mxu0 %v128
  %v1225 = vpop.f32.mrf.mxu0
  %v1226 = vadd.f32 %v1137, %v1225
  %1227 = vmatmul.f32.gmra.mxu0 %v134
  %v1228 = vpop.f32.mrf.mxu0
  %v1229 = vadd.f32 %v1140, %v1228
  %1230 = vmatmul.f32.gmra.mxu0 %v140
  %v1231 = vpop.f32.mrf.mxu0
  %v1232 = vadd.f32 %v1143, %v1231
  %1233 = vmatmul.f32.gmra.mxu0 %v146
  %v1234 = vpop.f32.mrf.mxu0
  %v1235 = vadd.f32 %v1146, %v1234
  %1236 = vmatmul.f32.gmra.mxu0 %v152
  %v1237 = vpop.f32.mrf.mxu0
  %v1238 = vadd.f32 %v1149, %v1237
  %1239 = vmatmul.f32.gmra.mxu0 %v158
  %v1240 = vpop.f32.mrf.mxu0
  %v1241 = vadd.f32 %v1152, %v1240
  %1242 = vdwg.mxu0
  %1243 = vmatpush.msra.mxu0 %v320
  %1244 = vmatpush.msra.mxu0 %v318
  %1245 = vmatpush.msra.mxu0 %v316
  %1246 = vmatpush.msra.mxu0 %v314
  %1247 = vmatpush.msra.mxu0 %v312
  %1248 = vmatpush.msra.mxu0 %v310
  %1249 = vmatpush.msra.mxu0 %v308
  %1250 = vmatpush.msra.mxu0 %v306
  %1251 = vmatpush.msra.mxu0 %v304
  %1252 = vmatpush.msra.mxu0 %v302
  %1253 = vmatpush.msra.mxu0 %v300
  %1254 = vmatpush.msra.mxu0 %v298
  %1255 = vmatpush.msra.mxu0 %v296
  %1256 = vmatpush.msra.mxu0 %v294
  %1257 = vmatpush.msra.mxu0 %v292
  %1258 = vmatpush.msra.mxu0 %v290
  %1259 = vmatmul.f32.gmra.mxu0 %v21
  %v1260 = vpop.f32.mrf.mxu0
  %v1261 = vadd.f32 %v1172, %v1260
  %1262 = vmatmul.f32.gmra.mxu0 %v27
  %v1263 = vpop.f32.mrf.mxu0
  %v1264 = vadd.f32 %v1175, %v1263
  %1265 = vmatmul.f32.gmra.mxu0 %v33
  %v1266 = vpop.f32.mrf.mxu0
  %v1267 = vadd.f32 %v1178, %v1266
  %1268 = vmatmul.f32.gmra.mxu0 %v39
  %v1269 = vpop.f32.mrf.mxu0
  %v1270 = vadd.f32 %v1181, %v1269
  %1271 = vmatmul.f32.gmra.mxu0 %v45
  %v1272 = vpop.f32.mrf.mxu0
  %v1273 = vadd.f32 %v1184, %v1272
  %1274 = vmatmul.f32.gmra.mxu0 %v51
  %v1275 = vpop.f32.mrf.mxu0
  %v1276 = vadd.f32 %v1187, %v1275
  %1277 = vmatmul.f32.gmra.mxu0 %v57
  %v1278 = vpop.f32.mrf.mxu0
  %v1279 = vadd.f32 %v1190, %v1278
  %1280 = vmatmul.f32.gmra.mxu0 %v63
  %v1281 = vpop.f32.mrf.mxu0
  %v1282 = vadd.f32 %v1193, %v1281
  %1283 = vmatmul.f32.gmra.mxu0 %v69
  %v1284 = vpop.f32.mrf.mxu0
  %v1285 = vadd.f32 %v1196, %v1284
  %1286 = vmatmul.f32.gmra.mxu0 %v75
  %v1287 = vpop.f32.mrf.mxu0
  %v1288 = vadd.f32 %v1199, %v1287
  %1289 = vmatmul.f32.gmra.mxu0 %v81
  %v1290 = vpop.f32.mrf.mxu0
  %v1291 = vadd.f32 %v1202, %v1290
  %1292 = vmatmul.f32.gmra.mxu0 %v87
  %v1293 = vpop.f32.mrf.mxu0
  %v1294 = vadd.f32 %v1205, %v1293
  %1295 = vmatmul.f32.gmra.mxu0 %v93
  %v1296 = vpop.f32.mrf.mxu0
  %v1297 = vadd.f32 %v1208, %v1296
  %1298 = vmatmul.f32.gmra.mxu0 %v99
  %v1299 = vpop.f32.mrf.mxu0
  %v1300 = vadd.f32 %v1211, %v1299
  %1301 = vmatmul.f32.gmra.mxu0 %v105
  %v1302 = vpop.f32.mrf.mxu0
  %v1303 = vadd.f32 %v1214, %v1302
  %1304 = vmatmul.f32.gmra.mxu0 %v111
  %v1305 = vpop.f32.mrf.mxu0
  %v1306 = vadd.f32 %v1217, %v1305
  %1307 = vmatmul.f32.gmra.mxu0 %v117
  %v1308 = vpop.f32.mrf.mxu0
  %v1309 = vadd.f32 %v1220, %v1308
  %1310 = vmatmul.f32.gmra.mxu0 %v123
  %v1311 = vpop.f32.mrf.mxu0
  %v1312 = vadd.f32 %v1223, %v1311
  %1313 = vmatmul.f32.gmra.mxu0 %v129
  %v1314 = vpop.f32.mrf.mxu0
  %v1315 = vadd.f32 %v1226, %v1314
  %1316 = vmatmul.f32.gmra.mxu0 %v135
  %v1317 = vpop.f32.mrf.mxu0
  %v1318 = vadd.f32 %v1229, %v1317
  %1319 = vmatmul.f32.gmra.mxu0 %v141
  %v1320 = vpop.f32.mrf.mxu0
  %v1321 = vadd.f32 %v1232, %v1320
  %1322 = vmatmul.f32.gmra.mxu0 %v147
  %v1323 = vpop.f32.mrf.mxu0
  %v1324 = vadd.f32 %v1235, %v1323
  %1325 = vmatmul.f32.gmra.mxu0 %v153
  %v1326 = vpop.f32.mrf.mxu0
  %v1327 = vadd.f32 %v1238, %v1326
  %1328 = vmatmul.f32.gmra.mxu0 %v159
  %v1329 = vpop.f32.mrf.mxu0
  %v1330 = vadd.f32 %v1241, %v1329
  %1331 = vdwg.mxu0
  %1332 = vmatpush.msra.mxu0 %v352
  %1333 = vmatpush.msra.mxu0 %v350
  %1334 = vmatpush.msra.mxu0 %v348
  %1335 = vmatpush.msra.mxu0 %v346
  %1336 = vmatpush.msra.mxu0 %v344
  %1337 = vmatpush.msra.mxu0 %v342
  %1338 = vmatpush.msra.mxu0 %v340
  %1339 = vmatpush.msra.mxu0 %v338
  %1340 = vmatpush.msra.mxu0 %v336
  %1341 = vmatpush.msra.mxu0 %v334
  %1342 = vmatpush.msra.mxu0 %v332
  %1343 = vmatpush.msra.mxu0 %v330
  %1344 = vmatpush.msra.mxu0 %v328
  %1345 = vmatpush.msra.mxu0 %v326
  %1346 = vmatpush.msra.mxu0 %v324
  %1347 = vmatpush.msra.mxu0 %v322
  %1348 = vmatmul.f32.gmra.mxu0 %v22
  %v1349 = vpop.f32.mrf.mxu0
  %v1350 = vadd.f32 %v1261, %v1349
  %1351 = vmatmul.f32.gmra.mxu0 %v28
  %v1352 = vpop.f32.mrf.mxu0
  %v1353 = vadd.f32 %v1264, %v1352
  %1354 = vmatmul.f32.gmra.mxu0 %v34
  %v1355 = vpop.f32.mrf.mxu0
  %v1356 = vadd.f32 %v1267, %v1355
  %1357 = vmatmul.f32.gmra.mxu0 %v40
  %v1358 = vpop.f32.mrf.mxu0
  %v1359 = vadd.f32 %v1270, %v1358
  %1360 = vmatmul.f32.gmra.mxu0 %v46
  %v1361 = vpop.f32.mrf.mxu0
  %v1362 = vadd.f32 %v1273, %v1361
  %1363 = vmatmul.f32.gmra.mxu0 %v52
  %v1364 = vpop.f32.mrf.mxu0
  %v1365 = vadd.f32 %v1276, %v1364
  %1366 = vmatmul.f32.gmra.mxu0 %v58
  %v1367 = vpop.f32.mrf.mxu0
  %v1368 = vadd.f32 %v1279, %v1367
  %1369 = vmatmul.f32.gmra.mxu0 %v64
  %v1370 = vpop.f32.mrf.mxu0
  %v1371 = vadd.f32 %v1282, %v1370
  %1372 = vmatmul.f32.gmra.mxu0 %v70
  %v1373 = vpop.f32.mrf.mxu0
  %v1374 = vadd.f32 %v1285, %v1373
  %1375 = vmatmul.f32.gmra.mxu0 %v76
  %v1376 = vpop.f32.mrf.mxu0
  %v1377 = vadd.f32 %v1288, %v1376
  %1378 = vmatmul.f32.gmra.mxu0 %v82
  %v1379 = vpop.f32.mrf.mxu0
  %v1380 = vadd.f32 %v1291, %v1379
  %1381 = vmatmul.f32.gmra.mxu0 %v88
  %v1382 = vpop.f32.mrf.mxu0
  %v1383 = vadd.f32 %v1294, %v1382
  %1384 = vmatmul.f32.gmra.mxu0 %v94
  %v1385 = vpop.f32.mrf.mxu0
  %v1386 = vadd.f32 %v1297, %v1385
  %1387 = vmatmul.f32.gmra.mxu0 %v100
  %v1388 = vpop.f32.mrf.mxu0
  %v1389 = vadd.f32 %v1300, %v1388
  %1390 = vmatmul.f32.gmra.mxu0 %v106
  %v1391 = vpop.f32.mrf.mxu0
  %v1392 = vadd.f32 %v1303, %v1391
  %1393 = vmatmul.f32.gmra.mxu0 %v112
  %v1394 = vpop.f32.mrf.mxu0
  %v1395 = vadd.f32 %v1306, %v1394
  %1396 = vmatmul.f32.gmra.mxu0 %v118
  %v1397 = vpop.f32.mrf.mxu0
  %v1398 = vadd.f32 %v1309, %v1397
  %1399 = vmatmul.f32.gmra.mxu0 %v124
  %v1400 = vpop.f32.mrf.mxu0
  %v1401 = vadd.f32 %v1312, %v1400
  %1402 = vmatmul.f32.gmra.mxu0 %v130
  %v1403 = vpop.f32.mrf.mxu0
  %v1404 = vadd.f32 %v1315, %v1403
  %1405 = vmatmul.f32.gmra.mxu0 %v136
  %v1406 = vpop.f32.mrf.mxu0
  %v1407 = vadd.f32 %v1318, %v1406
  %1408 = vmatmul.f32.gmra.mxu0 %v142
  %v1409 = vpop.f32.mrf.mxu0
  %v1410 = vadd.f32 %v1321, %v1409
  %1411 = vmatmul.f32.gmra.mxu0 %v148
  %v1412 = vpop.f32.mrf.mxu0
  %v1413 = vadd.f32 %v1324, %v1412
  %1414 = vmatmul.f32.gmra.mxu0 %v154
  %v1415 = vpop.f32.mrf.mxu0
  %v1416 = vadd.f32 %v1327, %v1415
  %1417 = vmatmul.f32.gmra.mxu0 %v160
  %v1418 = vpop.f32.mrf.mxu0
  %v1419 = vadd.f32 %v1330, %v1418
  %1420 = vdwg.mxu0
  %vm1421 = vcmask 130048
  %v1422 = vsel %vm1421, %v1350, 0.0
  %v1423 = vadd.f32 %v816, %v1422
  %1424 = vadd.xlane.f32.xlu0 %v1423
  %v1425 = vpop.xlane.xlu0 %1424
  %v1426 = vsel %vm1421, %v1353, 0.0
  %v1427 = vadd.f32 %v819, %v1426
  %1428 = vadd.xlane.f32.xlu0 %v1427
  %v1429 = vpop.xlane.xlu0 %1428
  %v1430 = vsel %vm1421, %v1356, 0.0
  %v1431 = vadd.f32 %v822, %v1430
  %1432 = vadd.xlane.f32.xlu0 %v1431
  %v1433 = vpop.xlane.xlu0 %1432
  %v1434 = vsel %vm1421, %v1359, 0.0
  %v1435 = vadd.f32 %v825, %v1434
  %1436 = vadd.xlane.f32.xlu0 %v1435
  %v1437 = vpop.xlane.xlu0 %1436
  %v1438 = vsel %vm1421, %v1362, 0.0
  %v1439 = vadd.f32 %v828, %v1438
  %1440 = vadd.xlane.f32.xlu0 %v1439
  %v1441 = vpop.xlane.xlu0 %1440
  %v1442 = vsel %vm1421, %v1365, 0.0
  %v1443 = vadd.f32 %v831, %v1442
  %1444 = vadd.xlane.f32.xlu0 %v1443
  %v1445 = vpop.xlane.xlu0 %1444
  %v1446 = vsel %vm1421, %v1368, 0.0
  %v1447 = vadd.f32 %v834, %v1446
  %1448 = vadd.xlane.f32.xlu0 %v1447
  %v1449 = vpop.xlane.xlu0 %1448
  %v1450 = vsel %vm1421, %v1371, 0.0
  %v1451 = vadd.f32 %v837, %v1450
  %1452 = vadd.xlane.f32.xlu0 %v1451
  %v1453 = vpop.xlane.xlu0 %1452
  %v1454 = vsel %vm1421, %v1374, 0.0
  %v1455 = vadd.f32 %v840, %v1454
  %1456 = vadd.xlane.f32.xlu0 %v1455
  %v1457 = vpop.xlane.xlu0 %1456
  %v1458 = vsel %vm1421, %v1377, 0.0
  %v1459 = vadd.f32 %v843, %v1458
  %1460 = vadd.xlane.f32.xlu0 %v1459
  %v1461 = vpop.xlane.xlu0 %1460
  %v1462 = vsel %vm1421, %v1380, 0.0
  %v1463 = vadd.f32 %v846, %v1462
  %1464 = vadd.xlane.f32.xlu0 %v1463
  %v1465 = vpop.xlane.xlu0 %1464
  %v1466 = vsel %vm1421, %v1383, 0.0
  %v1467 = vadd.f32 %v849, %v1466
  %1468 = vadd.xlane.f32.xlu0 %v1467
  %v1469 = vpop.xlane.xlu0 %1468
  %v1470 = vsel %vm1421, %v1386, 0.0
  %v1471 = vadd.f32 %v852, %v1470
  %1472 = vadd.xlane.f32.xlu0 %v1471
  %v1473 = vpop.xlane.xlu0 %1472
  %v1474 = vsel %vm1421, %v1389, 0.0
  %v1475 = vadd.f32 %v855, %v1474
  %1476 = vadd.xlane.f32.xlu0 %v1475
  %v1477 = vpop.xlane.xlu0 %1476
  %v1478 = vsel %vm1421, %v1392, 0.0
  %v1479 = vadd.f32 %v858, %v1478
  %1480 = vadd.xlane.f32.xlu0 %v1479
  %v1481 = vpop.xlane.xlu0 %1480
  %v1482 = vsel %vm1421, %v1395, 0.0
  %v1483 = vadd.f32 %v861, %v1482
  %1484 = vadd.xlane.f32.xlu0 %v1483
  %v1485 = vpop.xlane.xlu0 %1484
  %v1486 = vsel %vm1421, %v1398, 0.0
  %v1487 = vadd.f32 %v864, %v1486
  %1488 = vadd.xlane.f32.xlu0 %v1487
  %v1489 = vpop.xlane.xlu0 %1488
  %v1490 = vsel %vm1421, %v1401, 0.0
  %v1491 = vadd.f32 %v867, %v1490
  %1492 = vadd.xlane.f32.xlu0 %v1491
  %v1493 = vpop.xlane.xlu0 %1492
  %v1494 = vsel %vm1421, %v1404, 0.0
  %v1495 = vadd.f32 %v870, %v1494
  %1496 = vadd.xlane.f32.xlu0 %v1495
  %v1497 = vpop.xlane.xlu0 %1496
  %v1498 = vsel %vm1421, %v1407, 0.0
  %v1499 = vadd.f32 %v873, %v1498
  %1500 = vadd.xlane.f32.xlu0 %v1499
  %v1501 = vpop.xlane.xlu0 %1500
  %v1502 = vsel %vm1421, %v1410, 0.0
  %v1503 = vadd.f32 %v876, %v1502
  %1504 = vadd.xlane.f32.xlu0 %v1503
  %v1505 = vpop.xlane.xlu0 %1504
  %v1506 = vsel %vm1421, %v1413, 0.0
  %v1507 = vadd.f32 %v879, %v1506
  %1508 = vadd.xlane.f32.xlu0 %v1507
  %v1509 = vpop.xlane.xlu0 %1508
  %v1510 = vsel %vm1421, %v1416, 0.0
  %v1511 = vadd.f32 %v882, %v1510
  %1512 = vadd.xlane.f32.xlu0 %v1511
  %v1513 = vpop.xlane.xlu0 %1512
  %v1514 = vsel %vm1421, %v1419, 0.0
  %v1515 = vadd.f32 %v885, %v1514
  %1516 = vadd.xlane.f32.xlu0 %v1515
  %v1517 = vpop.xlane.xlu0 %1516
  %v1518 = vmul.f32 %v816, %v816
  %v1519 = vmul.f32 %v1350, %v1350
  %v1520 = vmul.f32 %v819, %v819
  %v1521 = vmul.f32 %v1353, %v1353
  %v1522 = vmul.f32 %v822, %v822
  %v1523 = vmul.f32 %v1356, %v1356
  %v1524 = vmul.f32 %v825, %v825
  %v1525 = vmul.f32 %v1359, %v1359
  %v1526 = vmul.f32 %v828, %v828
  %v1527 = vmul.f32 %v1362, %v1362
  %v1528 = vmul.f32 %v831, %v831
  %v1529 = vmul.f32 %v1365, %v1365
  %v1530 = vmul.f32 %v834, %v834
  %v1531 = vmul.f32 %v1368, %v1368
  %v1532 = vmul.f32 %v837, %v837
  %v1533 = vmul.f32 %v1371, %v1371
  %v1534 = vmul.f32 %v840, %v840
  %v1535 = vmul.f32 %v1374, %v1374
  %v1536 = vmul.f32 %v843, %v843
  %v1537 = vmul.f32 %v1377, %v1377
  %v1538 = vmul.f32 %v846, %v846
  %v1539 = vmul.f32 %v1380, %v1380
  %v1540 = vmul.f32 %v849, %v849
  %v1541 = vmul.f32 %v1383, %v1383
  %v1542 = vmul.f32 %v852, %v852
  %v1543 = vmul.f32 %v1386, %v1386
  %v1544 = vmul.f32 %v855, %v855
  %v1545 = vmul.f32 %v1389, %v1389
  %v1546 = vmul.f32 %v858, %v858
  %v1547 = vmul.f32 %v1392, %v1392
  %v1548 = vmul.f32 %v861, %v861
  %v1549 = vmul.f32 %v1395, %v1395
  %v1550 = vmul.f32 %v864, %v864
  %v1551 = vmul.f32 %v1398, %v1398
  %v1552 = vmul.f32 %v867, %v867
  %v1553 = vmul.f32 %v1401, %v1401
  %v1554 = vmul.f32 %v870, %v870
  %v1555 = vmul.f32 %v1404, %v1404
  %v1556 = vmul.f32 %v873, %v873
  %v1557 = vmul.f32 %v1407, %v1407
  %v1558 = vmul.f32 %v876, %v876
  %v1559 = vmul.f32 %v1410, %v1410
  %v1560 = vmul.f32 %v879, %v879
  %v1561 = vmul.f32 %v1413, %v1413
  %v1562 = vmul.f32 %v882, %v882
  %v1563 = vmul.f32 %v1416, %v1416
  %v1564 = vmul.f32 %v885, %v885
  %v1565 = vmul.f32 %v1419, %v1419
  %v1566 = vsel %vm1421, %v1519, 0.0
  %v1567 = vadd.f32 %v1518, %v1566
  %1568 = vadd.xlane.f32.xlu0 %v1567
  %v1569 = vpop.xlane.xlu0 %1568
  %v1570 = vsel %vm1421, %v1521, 0.0
  %v1571 = vadd.f32 %v1520, %v1570
  %1572 = vadd.xlane.f32.xlu0 %v1571
  %v1573 = vpop.xlane.xlu0 %1572
  %v1574 = vsel %vm1421, %v1523, 0.0
  %v1575 = vadd.f32 %v1522, %v1574
  %1576 = vadd.xlane.f32.xlu0 %v1575
  %v1577 = vpop.xlane.xlu0 %1576
  %v1578 = vsel %vm1421, %v1525, 0.0
  %v1579 = vadd.f32 %v1524, %v1578
  %1580 = vadd.xlane.f32.xlu0 %v1579
  %v1581 = vpop.xlane.xlu0 %1580
  %v1582 = vsel %vm1421, %v1527, 0.0
  %v1583 = vadd.f32 %v1526, %v1582
  %1584 = vadd.xlane.f32.xlu0 %v1583
  %v1585 = vpop.xlane.xlu0 %1584
  %v1586 = vsel %vm1421, %v1529, 0.0
  %v1587 = vadd.f32 %v1528, %v1586
  %1588 = vadd.xlane.f32.xlu0 %v1587
  %v1589 = vpop.xlane.xlu0 %1588
  %v1590 = vsel %vm1421, %v1531, 0.0
  %v1591 = vadd.f32 %v1530, %v1590
  %1592 = vadd.xlane.f32.xlu0 %v1591
  %v1593 = vpop.xlane.xlu0 %1592
  %v1594 = vsel %vm1421, %v1533, 0.0
  %v1595 = vadd.f32 %v1532, %v1594
  %1596 = vadd.xlane.f32.xlu0 %v1595
  %v1597 = vpop.xlane.xlu0 %1596
  %v1598 = vsel %vm1421, %v1535, 0.0
  %v1599 = vadd.f32 %v1534, %v1598
  %1600 = vadd.xlane.f32.xlu0 %v1599
  %v1601 = vpop.xlane.xlu0 %1600
  %v1602 = vsel %vm1421, %v1537, 0.0
  %v1603 = vadd.f32 %v1536, %v1602
  %1604 = vadd.xlane.f32.xlu0 %v1603
  %v1605 = vpop.xlane.xlu0 %1604
  %v1606 = vsel %vm1421, %v1539, 0.0
  %v1607 = vadd.f32 %v1538, %v1606
  %1608 = vadd.xlane.f32.xlu0 %v1607
  %v1609 = vpop.xlane.xlu0 %1608
  %v1610 = vsel %vm1421, %v1541, 0.0
  %v1611 = vadd.f32 %v1540, %v1610
  %1612 = vadd.xlane.f32.xlu0 %v1611
  %v1613 = vpop.xlane.xlu0 %1612
  %v1614 = vsel %vm1421, %v1543, 0.0
  %v1615 = vadd.f32 %v1542, %v1614
  %1616 = vadd.xlane.f32.xlu0 %v1615
  %v1617 = vpop.xlane.xlu0 %1616
  %v1618 = vsel %vm1421, %v1545, 0.0
  %v1619 = vadd.f32 %v1544, %v1618
  %1620 = vadd.xlane.f32.xlu0 %v1619
  %v1621 = vpop.xlane.xlu0 %1620
  %v1622 = vsel %vm1421, %v1547, 0.0
  %v1623 = vadd.f32 %v1546, %v1622
  %1624 = vadd.xlane.f32.xlu0 %v1623
  %v1625 = vpop.xlane.xlu0 %1624
  %v1626 = vsel %vm1421, %v1549, 0.0
  %v1627 = vadd.f32 %v1548, %v1626
  %1628 = vadd.xlane.f32.xlu0 %v1627
  %v1629 = vpop.xlane.xlu0 %1628
  %v1630 = vsel %vm1421, %v1551, 0.0
  %v1631 = vadd.f32 %v1550, %v1630
  %1632 = vadd.xlane.f32.xlu0 %v1631
  %v1633 = vpop.xlane.xlu0 %1632
  %v1634 = vsel %vm1421, %v1553, 0.0
  %v1635 = vadd.f32 %v1552, %v1634
  %1636 = vadd.xlane.f32.xlu0 %v1635
  %v1637 = vpop.xlane.xlu0 %1636
  %v1638 = vsel %vm1421, %v1555, 0.0
  %v1639 = vadd.f32 %v1554, %v1638
  %1640 = vadd.xlane.f32.xlu0 %v1639
  %v1641 = vpop.xlane.xlu0 %1640
  %v1642 = vsel %vm1421, %v1557, 0.0
  %v1643 = vadd.f32 %v1556, %v1642
  %1644 = vadd.xlane.f32.xlu0 %v1643
  %v1645 = vpop.xlane.xlu0 %1644
  %v1646 = vsel %vm1421, %v1559, 0.0
  %v1647 = vadd.f32 %v1558, %v1646
  %1648 = vadd.xlane.f32.xlu0 %v1647
  %v1649 = vpop.xlane.xlu0 %1648
  %v1650 = vsel %vm1421, %v1561, 0.0
  %v1651 = vadd.f32 %v1560, %v1650
  %1652 = vadd.xlane.f32.xlu0 %v1651
  %v1653 = vpop.xlane.xlu0 %1652
  %v1654 = vsel %vm1421, %v1563, 0.0
  %v1655 = vadd.f32 %v1562, %v1654
  %1656 = vadd.xlane.f32.xlu0 %v1655
  %v1657 = vpop.xlane.xlu0 %1656
  %v1658 = vsel %vm1421, %v1565, 0.0
  %v1659 = vadd.f32 %v1564, %v1658
  %1660 = vadd.xlane.f32.xlu0 %v1659
  %v1661 = vpop.xlane.xlu0 %1660
  %v1662 = vmul.f32 %v1425, 0.0069444445
  %v1663 = vmul.f32 %v1429, 0.0069444445
  %v1664 = vmul.f32 %v1433, 0.0069444445
  %v1665 = vmul.f32 %v1437, 0.0069444445
  %v1666 = vmul.f32 %v1441, 0.0069444445
  %v1667 = vmul.f32 %v1445, 0.0069444445
  %v1668 = vmul.f32 %v1449, 0.0069444445
  %v1669 = vmul.f32 %v1453, 0.0069444445
  %v1670 = vmul.f32 %v1457, 0.0069444445
  %v1671 = vmul.f32 %v1461, 0.0069444445
  %v1672 = vmul.f32 %v1465, 0.0069444445
  %v1673 = vmul.f32 %v1469, 0.0069444445
  %v1674 = vmul.f32 %v1473, 0.0069444445
  %v1675 = vmul.f32 %v1477, 0.0069444445
  %v1676 = vmul.f32 %v1481, 0.0069444445
  %v1677 = vmul.f32 %v1485, 0.0069444445
  %v1678 = vmul.f32 %v1489, 0.0069444445
  %v1679 = vmul.f32 %v1493, 0.0069444445
  %v1680 = vmul.f32 %v1497, 0.0069444445
  %v1681 = vmul.f32 %v1501, 0.0069444445
  %v1682 = vmul.f32 %v1505, 0.0069444445
  %v1683 = vmul.f32 %v1509, 0.0069444445
  %v1684 = vmul.f32 %v1513, 0.0069444445
  %v1685 = vmul.f32 %v1517, 0.0069444445
  %v1686 = vmul.f32 %v1569, 0.0069444445
  %v1687 = vmul.f32 %v1573, 0.0069444445
  %v1688 = vmul.f32 %v1577, 0.0069444445
  %v1689 = vmul.f32 %v1581, 0.0069444445
  %v1690 = vmul.f32 %v1585, 0.0069444445
  %v1691 = vmul.f32 %v1589, 0.0069444445
  %v1692 = vmul.f32 %v1593, 0.0069444445
  %v1693 = vmul.f32 %v1597, 0.0069444445
  %v1694 = vmul.f32 %v1601, 0.0069444445
  %v1695 = vmul.f32 %v1605, 0.0069444445
  %v1696 = vmul.f32 %v1609, 0.0069444445
  %v1697 = vmul.f32 %v1613, 0.0069444445
  %v1698 = vmul.f32 %v1617, 0.0069444445
  %v1699 = vmul.f32 %v1621, 0.0069444445
  %v1700 = vmul.f32 %v1625, 0.0069444445
  %v1701 = vmul.f32 %v1629, 0.0069444445
  %v1702 = vmul.f32 %v1633, 0.0069444445
  %v1703 = vmul.f32 %v1637, 0.0069444445
  %v1704 = vmul.f32 %v1641, 0.0069444445
  %v1705 = vmul.f32 %v1645, 0.0069444445
  %v1706 = vmul.f32 %v1649, 0.0069444445
  %v1707 = vmul.f32 %v1653, 0.0069444445
  %v1708 = vmul.f32 %v1657, 0.0069444445
  %v1709 = vmul.f32 %v1661, 0.0069444445
  %v1710 = vmul.f32 %v1662, %v1662
  %v1711 = vmul.f32 %v1663, %v1663
  %v1712 = vmul.f32 %v1664, %v1664
  %v1713 = vmul.f32 %v1665, %v1665
  %v1714 = vmul.f32 %v1666, %v1666
  %v1715 = vmul.f32 %v1667, %v1667
  %v1716 = vmul.f32 %v1668, %v1668
  %v1717 = vmul.f32 %v1669, %v1669
  %v1718 = vmul.f32 %v1670, %v1670
  %v1719 = vmul.f32 %v1671, %v1671
  %v1720 = vmul.f32 %v1672, %v1672
  %v1721 = vmul.f32 %v1673, %v1673
  %v1722 = vmul.f32 %v1674, %v1674
  %v1723 = vmul.f32 %v1675, %v1675
  %v1724 = vmul.f32 %v1676, %v1676
  %v1725 = vmul.f32 %v1677, %v1677
  %v1726 = vmul.f32 %v1678, %v1678
  %v1727 = vmul.f32 %v1679, %v1679
  %v1728 = vmul.f32 %v1680, %v1680
  %v1729 = vmul.f32 %v1681, %v1681
  %v1730 = vmul.f32 %v1682, %v1682
  %v1731 = vmul.f32 %v1683, %v1683
  %v1732 = vmul.f32 %v1684, %v1684
  %v1733 = vmul.f32 %v1685, %v1685
  %v1734 = vsub.f32 %v1686, %v1710
  %v1735 = vsub.f32 %v1687, %v1711
  %v1736 = vsub.f32 %v1688, %v1712
  %v1737 = vsub.f32 %v1689, %v1713
  %v1738 = vsub.f32 %v1690, %v1714
  %v1739 = vsub.f32 %v1691, %v1715
  %v1740 = vsub.f32 %v1692, %v1716
  %v1741 = vsub.f32 %v1693, %v1717
  %v1742 = vsub.f32 %v1694, %v1718
  %v1743 = vsub.f32 %v1695, %v1719
  %v1744 = vsub.f32 %v1696, %v1720
  %v1745 = vsub.f32 %v1697, %v1721
  %v1746 = vsub.f32 %v1698, %v1722
  %v1747 = vsub.f32 %v1699, %v1723
  %v1748 = vsub.f32 %v1700, %v1724
  %v1749 = vsub.f32 %v1701, %v1725
  %v1750 = vsub.f32 %v1702, %v1726
  %v1751 = vsub.f32 %v1703, %v1727
  %v1752 = vsub.f32 %v1704, %v1728
  %v1753 = vsub.f32 %v1705, %v1729
  %v1754 = vsub.f32 %v1706, %v1730
  %v1755 = vsub.f32 %v1707, %v1731
  %v1756 = vsub.f32 %v1708, %v1732
  %v1757 = vsub.f32 %v1709, %v1733
  %v1758 = vadd.f32 %v1734, 0.001
  %v1759 = vadd.f32 %v1735, 0.001
  %v1760 = vadd.f32 %v1736, 0.001
  %v1761 = vadd.f32 %v1737, 0.001
  %v1762 = vadd.f32 %v1738, 0.001
  %v1763 = vadd.f32 %v1739, 0.001
  %v1764 = vadd.f32 %v1740, 0.001
  %v1765 = vadd.f32 %v1741, 0.001
  %v1766 = vadd.f32 %v1742, 0.001
  %v1767 = vadd.f32 %v1743, 0.001
  %v1768 = vadd.f32 %v1744, 0.001
  %v1769 = vadd.f32 %v1745, 0.001
  %v1770 = vadd.f32 %v1746, 0.001
  %v1771 = vadd.f32 %v1747, 0.001
  %v1772 = vadd.f32 %v1748, 0.001
  %v1773 = vadd.f32 %v1749, 0.001
  %v1774 = vadd.f32 %v1750, 0.001
  %v1775 = vadd.f32 %v1751, 0.001
  %v1776 = vadd.f32 %v1752, 0.001
  %v1777 = vadd.f32 %v1753, 0.001
  %v1778 = vadd.f32 %v1754, 0.001
  %v1779 = vadd.f32 %v1755, 0.001
  %v1780 = vadd.f32 %v1756, 0.001
  %v1781 = vadd.f32 %v1757, 0.001
  %v1782 = vrsqrt.pop %v1758
  %v1783 = vmul.f32 %v1782, %v1758
  %v1784 = vmul.f32 %v1783, %v1782
  %v1785 = vmul.f32 0.5, %v1784
  %v1786 = vsub.f32 1.5, %v1785
  %v1787 = vmul.f32 %v1782, %v1786
  %vm1788 = vweird.f32 %v1758
  %vm1789 = vweird.f32 %v1782
  %vm1790 = vmor %vm1788, %vm1789
  %v1791 = vsel %vm1790, %v1782, %v1787
  %v1792 = vrsqrt.pop %v1759
  %v1793 = vmul.f32 %v1792, %v1759
  %v1794 = vmul.f32 %v1793, %v1792
  %v1795 = vmul.f32 0.5, %v1794
  %v1796 = vsub.f32 1.5, %v1795
  %v1797 = vmul.f32 %v1792, %v1796
  %vm1798 = vweird.f32 %v1759
  %vm1799 = vweird.f32 %v1792
  %vm1800 = vmor %vm1798, %vm1799
  %v1801 = vsel %vm1800, %v1792, %v1797
  %v1802 = vrsqrt.pop %v1760
  %v1803 = vmul.f32 %v1802, %v1760
  %v1804 = vmul.f32 %v1803, %v1802
  %v1805 = vmul.f32 0.5, %v1804
  %v1806 = vsub.f32 1.5, %v1805
  %v1807 = vmul.f32 %v1802, %v1806
  %vm1808 = vweird.f32 %v1760
  %vm1809 = vweird.f32 %v1802
  %vm1810 = vmor %vm1808, %vm1809
  %v1811 = vsel %vm1810, %v1802, %v1807
  %v1812 = vrsqrt.pop %v1761
  %v1813 = vmul.f32 %v1812, %v1761
  %v1814 = vmul.f32 %v1813, %v1812
  %v1815 = vmul.f32 0.5, %v1814
  %v1816 = vsub.f32 1.5, %v1815
  %v1817 = vmul.f32 %v1812, %v1816
  %vm1818 = vweird.f32 %v1761
  %vm1819 = vweird.f32 %v1812
  %vm1820 = vmor %vm1818, %vm1819
  %v1821 = vsel %vm1820, %v1812, %v1817
  %v1822 = vrsqrt.pop %v1762
  %v1823 = vmul.f32 %v1822, %v1762
  %v1824 = vmul.f32 %v1823, %v1822
  %v1825 = vmul.f32 0.5, %v1824
  %v1826 = vsub.f32 1.5, %v1825
  %v1827 = vmul.f32 %v1822, %v1826
  %vm1828 = vweird.f32 %v1762
  %vm1829 = vweird.f32 %v1822
  %vm1830 = vmor %vm1828, %vm1829
  %v1831 = vsel %vm1830, %v1822, %v1827
  %v1832 = vrsqrt.pop %v1763
  %v1833 = vmul.f32 %v1832, %v1763
  %v1834 = vmul.f32 %v1833, %v1832
  %v1835 = vmul.f32 0.5, %v1834
  %v1836 = vsub.f32 1.5, %v1835
  %v1837 = vmul.f32 %v1832, %v1836
  %vm1838 = vweird.f32 %v1763
  %vm1839 = vweird.f32 %v1832
  %vm1840 = vmor %vm1838, %vm1839
  %v1841 = vsel %vm1840, %v1832, %v1837
  %v1842 = vrsqrt.pop %v1764
  %v1843 = vmul.f32 %v1842, %v1764
  %v1844 = vmul.f32 %v1843, %v1842
  %v1845 = vmul.f32 0.5, %v1844
  %v1846 = vsub.f32 1.5, %v1845
  %v1847 = vmul.f32 %v1842, %v1846
  %vm1848 = vweird.f32 %v1764
  %vm1849 = vweird.f32 %v1842
  %vm1850 = vmor %vm1848, %vm1849
  %v1851 = vsel %vm1850, %v1842, %v1847
  %v1852 = vrsqrt.pop %v1765
  %v1853 = vmul.f32 %v1852, %v1765
  %v1854 = vmul.f32 %v1853, %v1852
  %v1855 = vmul.f32 0.5, %v1854
  %v1856 = vsub.f32 1.5, %v1855
  %v1857 = vmul.f32 %v1852, %v1856
  %vm1858 = vweird.f32 %v1765
  %vm1859 = vweird.f32 %v1852
  %vm1860 = vmor %vm1858, %vm1859
  %v1861 = vsel %vm1860, %v1852, %v1857
  %v1862 = vrsqrt.pop %v1766
  %v1863 = vmul.f32 %v1862, %v1766
  %v1864 = vmul.f32 %v1863, %v1862
  %v1865 = vmul.f32 0.5, %v1864
  %v1866 = vsub.f32 1.5, %v1865
  %v1867 = vmul.f32 %v1862, %v1866
  %vm1868 = vweird.f32 %v1766
  %vm1869 = vweird.f32 %v1862
  %vm1870 = vmor %vm1868, %vm1869
  %v1871 = vsel %vm1870, %v1862, %v1867
  %v1872 = vrsqrt.pop %v1767
  %v1873 = vmul.f32 %v1872, %v1767
  %v1874 = vmul.f32 %v1873, %v1872
  %v1875 = vmul.f32 0.5, %v1874
  %v1876 = vsub.f32 1.5, %v1875
  %v1877 = vmul.f32 %v1872, %v1876
  %vm1878 = vweird.f32 %v1767
  %vm1879 = vweird.f32 %v1872
  %vm1880 = vmor %vm1878, %vm1879
  %v1881 = vsel %vm1880, %v1872, %v1877
  %v1882 = vrsqrt.pop %v1768
  %v1883 = vmul.f32 %v1882, %v1768
  %v1884 = vmul.f32 %v1883, %v1882
  %v1885 = vmul.f32 0.5, %v1884
  %v1886 = vsub.f32 1.5, %v1885
  %v1887 = vmul.f32 %v1882, %v1886
  %vm1888 = vweird.f32 %v1768
  %vm1889 = vweird.f32 %v1882
  %vm1890 = vmor %vm1888, %vm1889
  %v1891 = vsel %vm1890, %v1882, %v1887
  %v1892 = vrsqrt.pop %v1769
  %v1893 = vmul.f32 %v1892, %v1769
  %v1894 = vmul.f32 %v1893, %v1892
  %v1895 = vmul.f32 0.5, %v1894
  %v1896 = vsub.f32 1.5, %v1895
  %v1897 = vmul.f32 %v1892, %v1896
  %vm1898 = vweird.f32 %v1769
  %vm1899 = vweird.f32 %v1892
  %vm1900 = vmor %vm1898, %vm1899
  %v1901 = vsel %vm1900, %v1892, %v1897
  %v1902 = vrsqrt.pop %v1770
  %v1903 = vmul.f32 %v1902, %v1770
  %v1904 = vmul.f32 %v1903, %v1902
  %v1905 = vmul.f32 0.5, %v1904
  %v1906 = vsub.f32 1.5, %v1905
  %v1907 = vmul.f32 %v1902, %v1906
  %vm1908 = vweird.f32 %v1770
  %vm1909 = vweird.f32 %v1902
  %vm1910 = vmor %vm1908, %vm1909
  %v1911 = vsel %vm1910, %v1902, %v1907
  %v1912 = vrsqrt.pop %v1771
  %v1913 = vmul.f32 %v1912, %v1771
  %v1914 = vmul.f32 %v1913, %v1912
  %v1915 = vmul.f32 0.5, %v1914
  %v1916 = vsub.f32 1.5, %v1915
  %v1917 = vmul.f32 %v1912, %v1916
  %vm1918 = vweird.f32 %v1771
  %vm1919 = vweird.f32 %v1912
  %vm1920 = vmor %vm1918, %vm1919
  %v1921 = vsel %vm1920, %v1912, %v1917
  %v1922 = vrsqrt.pop %v1772
  %v1923 = vmul.f32 %v1922, %v1772
  %v1924 = vmul.f32 %v1923, %v1922
  %v1925 = vmul.f32 0.5, %v1924
  %v1926 = vsub.f32 1.5, %v1925
  %v1927 = vmul.f32 %v1922, %v1926
  %vm1928 = vweird.f32 %v1772
  %vm1929 = vweird.f32 %v1922
  %vm1930 = vmor %vm1928, %vm1929
  %v1931 = vsel %vm1930, %v1922, %v1927
  %v1932 = vrsqrt.pop %v1773
  %v1933 = vmul.f32 %v1932, %v1773
  %v1934 = vmul.f32 %v1933, %v1932
  %v1935 = vmul.f32 0.5, %v1934
  %v1936 = vsub.f32 1.5, %v1935
  %v1937 = vmul.f32 %v1932, %v1936
  %vm1938 = vweird.f32 %v1773
  %vm1939 = vweird.f32 %v1932
  %vm1940 = vmor %vm1938, %vm1939
  %v1941 = vsel %vm1940, %v1932, %v1937
  %v1942 = vrsqrt.pop %v1774
  %v1943 = vmul.f32 %v1942, %v1774
  %v1944 = vmul.f32 %v1943, %v1942
  %v1945 = vmul.f32 0.5, %v1944
  %v1946 = vsub.f32 1.5, %v1945
  %v1947 = vmul.f32 %v1942, %v1946
  %vm1948 = vweird.f32 %v1774
  %vm1949 = vweird.f32 %v1942
  %vm1950 = vmor %vm1948, %vm1949
  %v1951 = vsel %vm1950, %v1942, %v1947
  %v1952 = vrsqrt.pop %v1775
  %v1953 = vmul.f32 %v1952, %v1775
  %v1954 = vmul.f32 %v1953, %v1952
  %v1955 = vmul.f32 0.5, %v1954
  %v1956 = vsub.f32 1.5, %v1955
  %v1957 = vmul.f32 %v1952, %v1956
  %vm1958 = vweird.f32 %v1775
  %vm1959 = vweird.f32 %v1952
  %vm1960 = vmor %vm1958, %vm1959
  %v1961 = vsel %vm1960, %v1952, %v1957
  %v1962 = vrsqrt.pop %v1776
  %v1963 = vmul.f32 %v1962, %v1776
  %v1964 = vmul.f32 %v1963, %v1962
  %v1965 = vmul.f32 0.5, %v1964
  %v1966 = vsub.f32 1.5, %v1965
  %v1967 = vmul.f32 %v1962, %v1966
  %vm1968 = vweird.f32 %v1776
  %vm1969 = vweird.f32 %v1962
  %vm1970 = vmor %vm1968, %vm1969
  %v1971 = vsel %vm1970, %v1962, %v1967
  %v1972 = vrsqrt.pop %v1777
  %v1973 = vmul.f32 %v1972, %v1777
  %v1974 = vmul.f32 %v1973, %v1972
  %v1975 = vmul.f32 0.5, %v1974
  %v1976 = vsub.f32 1.5, %v1975
  %v1977 = vmul.f32 %v1972, %v1976
  %vm1978 = vweird.f32 %v1777
  %vm1979 = vweird.f32 %v1972
  %vm1980 = vmor %vm1978, %vm1979
  %v1981 = vsel %vm1980, %v1972, %v1977
  %v1982 = vrsqrt.pop %v1778
  %v1983 = vmul.f32 %v1982, %v1778
  %v1984 = vmul.f32 %v1983, %v1982
  %v1985 = vmul.f32 0.5, %v1984
  %v1986 = vsub.f32 1.5, %v1985
  %v1987 = vmul.f32 %v1982, %v1986
  %vm1988 = vweird.f32 %v1778
  %vm1989 = vweird.f32 %v1982
  %vm1990 = vmor %vm1988, %vm1989
  %v1991 = vsel %vm1990, %v1982, %v1987
  %v1992 = vrsqrt.pop %v1779
  %v1993 = vmul.f32 %v1992, %v1779
  %v1994 = vmul.f32 %v1993, %v1992
  %v1995 = vmul.f32 0.5, %v1994
  %v1996 = vsub.f32 1.5, %v1995
  %v1997 = vmul.f32 %v1992, %v1996
  %vm1998 = vweird.f32 %v1779
  %vm1999 = vweird.f32 %v1992
  %vm2000 = vmor %vm1998, %vm1999
  %v2001 = vsel %vm2000, %v1992, %v1997
  %v2002 = vrsqrt.pop %v1780
  %v2003 = vmul.f32 %v2002, %v1780
  %v2004 = vmul.f32 %v2003, %v2002
  %v2005 = vmul.f32 0.5, %v2004
  %v2006 = vsub.f32 1.5, %v2005
  %v2007 = vmul.f32 %v2002, %v2006
  %vm2008 = vweird.f32 %v1780
  %vm2009 = vweird.f32 %v2002
  %vm2010 = vmor %vm2008, %vm2009
  %v2011 = vsel %vm2010, %v2002, %v2007
  %v2012 = vrsqrt.pop %v1781
  %v2013 = vmul.f32 %v2012, %v1781
  %v2014 = vmul.f32 %v2013, %v2012
  %v2015 = vmul.f32 0.5, %v2014
  %v2016 = vsub.f32 1.5, %v2015
  %v2017 = vmul.f32 %v2012, %v2016
  %vm2018 = vweird.f32 %v1781
  %vm2019 = vweird.f32 %v2012
  %vm2020 = vmor %vm2018, %vm2019
  %v2021 = vsel %vm2020, %v2012, %v2017
  %v2022 = vld [vmem:[%s2] sm:$0xff]
  %v2023 = vld [vmem:[%s2 + $0x8] sm:$0xff]
  %v2024 = vld [vmem:[%s2 + $0x10] sm:$0xff]
  %v2025 = vld [vmem:[%s2 + $0x18] sm:$0xff]
  %v2026 = vld [vmem:[%s2 + $0x20] sm:$0xff]
  %v2027 = vld [vmem:[%s2 + $0x28] sm:$0xff]
  %v2028 = vld [vmem:[%s2 + $0x30] sm:$0xff]
  %v2029 = vld [vmem:[%s2 + $0x38] sm:$0xff]
  %v2030 = vld [vmem:[%s2 + $0x40] sm:$0xff]
  %v2031 = vld [vmem:[%s2 + $0x48] sm:$0xff]
  %v2032 = vld [vmem:[%s2 + $0x50] sm:$0xff]
  %v2033 = vld [vmem:[%s2 + $0x58] sm:$0xff]
  %v2034 = vld [vmem:[%s2 + $0x60] sm:$0xff]
  %v2035 = vld [vmem:[%s2 + $0x68] sm:$0xff]
  %v2036 = vld [vmem:[%s2 + $0x70] sm:$0xff]
  %v2037 = vld [vmem:[%s2 + $0x78] sm:$0xff]
  %v2038 = vld [vmem:[%s2 + $0x80] sm:$0xff]
  %v2039 = vld [vmem:[%s2 + $0x88] sm:$0xff]
  %v2040 = vld [vmem:[%s2 + $0x90] sm:$0xff]
  %v2041 = vld [vmem:[%s2 + $0x98] sm:$0xff]
  %v2042 = vld [vmem:[%s2 + $0xa0] sm:$0xff]
  %v2043 = vld [vmem:[%s2 + $0xa8] sm:$0xff]
  %v2044 = vld [vmem:[%s2 + $0xb0] sm:$0xff]
  %v2045 = vld [vmem:[%s2 + $0xb8] sm:$0xff]
  %v2046 = vmul.f32 %v1791, %v2022
  %v2047 = vmul.f32 %v1801, %v2023
  %v2048 = vmul.f32 %v1811, %v2024
  %v2049 = vmul.f32 %v1821, %v2025
  %v2050 = vmul.f32 %v1831, %v2026
  %v2051 = vmul.f32 %v1841, %v2027
  %v2052 = vmul.f32 %v1851, %v2028
  %v2053 = vmul.f32 %v1861, %v2029
  %v2054 = vmul.f32 %v1871, %v2030
  %v2055 = vmul.f32 %v1881, %v2031
  %v2056 = vmul.f32 %v1891, %v2032
  %v2057 = vmul.f32 %v1901, %v2033
  %v2058 = vmul.f32 %v1911, %v2034
  %v2059 = vmul.f32 %v1921, %v2035
  %v2060 = vmul.f32 %v1931, %v2036
  %v2061 = vmul.f32 %v1941, %v2037
  %v2062 = vmul.f32 %v1951, %v2038
  %v2063 = vmul.f32 %v1961, %v2039
  %v2064 = vmul.f32 %v1971, %v2040
  %v2065 = vmul.f32 %v1981, %v2041
  %v2066 = vmul.f32 %v1991, %v2042
  %v2067 = vmul.f32 %v2001, %v2043
  %v2068 = vmul.f32 %v2011, %v2044
  %v2069 = vmul.f32 %v2021, %v2045
  %v2070 = vld [vmem:[%s3] sm:$0xff]
  %v2071 = vld [vmem:[%s3 + $0x8] sm:$0xff]
  %v2072 = vld [vmem:[%s3 + $0x10] sm:$0xff]
  %v2073 = vld [vmem:[%s3 + $0x18] sm:$0xff]
  %v2074 = vld [vmem:[%s3 + $0x20] sm:$0xff]
  %v2075 = vld [vmem:[%s3 + $0x28] sm:$0xff]
  %v2076 = vld [vmem:[%s3 + $0x30] sm:$0xff]
  %v2077 = vld [vmem:[%s3 + $0x38] sm:$0xff]
  %v2078 = vld [vmem:[%s3 + $0x40] sm:$0xff]
  %v2079 = vld [vmem:[%s3 + $0x48] sm:$0xff]
  %v2080 = vld [vmem:[%s3 + $0x50] sm:$0xff]
  %v2081 = vld [vmem:[%s3 + $0x58] sm:$0xff]
  %v2082 = vld [vmem:[%s3 + $0x60] sm:$0xff]
  %v2083 = vld [vmem:[%s3 + $0x68] sm:$0xff]
  %v2084 = vld [vmem:[%s3 + $0x70] sm:$0xff]
  %v2085 = vld [vmem:[%s3 + $0x78] sm:$0xff]
  %v2086 = vld [vmem:[%s3 + $0x80] sm:$0xff]
  %v2087 = vld [vmem:[%s3 + $0x88] sm:$0xff]
  %v2088 = vld [vmem:[%s3 + $0x90] sm:$0xff]
  %v2089 = vld [vmem:[%s3 + $0x98] sm:$0xff]
  %v2090 = vld [vmem:[%s3 + $0xa0] sm:$0xff]
  %v2091 = vld [vmem:[%s3 + $0xa8] sm:$0xff]
  %v2092 = vld [vmem:[%s3 + $0xb0] sm:$0xff]
  %v2093 = vld [vmem:[%s3 + $0xb8] sm:$0xff]
  %v2094 = vmul.f32 %v1662, %v2046
  %v2095 = vmul.f32 %v1663, %v2047
  %v2096 = vmul.f32 %v1664, %v2048
  %v2097 = vmul.f32 %v1665, %v2049
  %v2098 = vmul.f32 %v1666, %v2050
  %v2099 = vmul.f32 %v1667, %v2051
  %v2100 = vmul.f32 %v1668, %v2052
  %v2101 = vmul.f32 %v1669, %v2053
  %v2102 = vmul.f32 %v1670, %v2054
  %v2103 = vmul.f32 %v1671, %v2055
  %v2104 = vmul.f32 %v1672, %v2056
  %v2105 = vmul.f32 %v1673, %v2057
  %v2106 = vmul.f32 %v1674, %v2058
  %v2107 = vmul.f32 %v1675, %v2059
  %v2108 = vmul.f32 %v1676, %v2060
  %v2109 = vmul.f32 %v1677, %v2061
  %v2110 = vmul.f32 %v1678, %v2062
  %v2111 = vmul.f32 %v1679, %v2063
  %v2112 = vmul.f32 %v1680, %v2064
  %v2113 = vmul.f32 %v1681, %v2065
  %v2114 = vmul.f32 %v1682, %v2066
  %v2115 = vmul.f32 %v1683, %v2067
  %v2116 = vmul.f32 %v1684, %v2068
  %v2117 = vmul.f32 %v1685, %v2069
  %v2118 = vsub.f32 %v2070, %v2094
  %v2119 = vsub.f32 %v2071, %v2095
  %v2120 = vsub.f32 %v2072, %v2096
  %v2121 = vsub.f32 %v2073, %v2097
  %v2122 = vsub.f32 %v2074, %v2098
  %v2123 = vsub.f32 %v2075, %v2099
  %v2124 = vsub.f32 %v2076, %v2100
  %v2125 = vsub.f32 %v2077, %v2101
  %v2126 = vsub.f32 %v2078, %v2102
  %v2127 = vsub.f32 %v2079, %v2103
  %v2128 = vsub.f32 %v2080, %v2104
  %v2129 = vsub.f32 %v2081, %v2105
  %v2130 = vsub.f32 %v2082, %v2106
  %v2131 = vsub.f32 %v2083, %v2107
  %v2132 = vsub.f32 %v2084, %v2108
  %v2133 = vsub.f32 %v2085, %v2109
  %v2134 = vsub.f32 %v2086, %v2110
  %v2135 = vsub.f32 %v2087, %v2111
  %v2136 = vsub.f32 %v2088, %v2112
  %v2137 = vsub.f32 %v2089, %v2113
  %v2138 = vsub.f32 %v2090, %v2114
  %v2139 = vsub.f32 %v2091, %v2115
  %v2140 = vsub.f32 %v2092, %v2116
  %v2141 = vsub.f32 %v2093, %v2117
  %2143 = vset.pattern.permute.xlu0 0
  %2144 = vperm.xlu0 %2143, %v2046
  %v2145 = vpop.permute.xlu0 %2144
  %2148 = vset.pattern.permute.xlu0 0
  %2149 = vperm.xlu0 %2148, %v2047
  %v2150 = vpop.permute.xlu0 %2149
  %2153 = vset.pattern.permute.xlu0 0
  %2154 = vperm.xlu0 %2153, %v2048
  %v2155 = vpop.permute.xlu0 %2154
  %2158 = vset.pattern.permute.xlu0 0
  %2159 = vperm.xlu0 %2158, %v2049
  %v2160 = vpop.permute.xlu0 %2159
  %2163 = vset.pattern.permute.xlu0 0
  %2164 = vperm.xlu0 %2163, %v2050
  %v2165 = vpop.permute.xlu0 %2164
  %2168 = vset.pattern.permute.xlu0 0
  %2169 = vperm.xlu0 %2168, %v2051
  %v2170 = vpop.permute.xlu0 %2169
  %2173 = vset.pattern.permute.xlu0 0
  %2174 = vperm.xlu0 %2173, %v2052
  %v2175 = vpop.permute.xlu0 %2174
  %2178 = vset.pattern.permute.xlu0 0
  %2179 = vperm.xlu0 %2178, %v2053
  %v2180 = vpop.permute.xlu0 %2179
  %2183 = vset.pattern.permute.xlu0 0
  %2184 = vperm.xlu0 %2183, %v2054
  %v2185 = vpop.permute.xlu0 %2184
  %2188 = vset.pattern.permute.xlu0 0
  %2189 = vperm.xlu0 %2188, %v2055
  %v2190 = vpop.permute.xlu0 %2189
  %2193 = vset.pattern.permute.xlu0 0
  %2194 = vperm.xlu0 %2193, %v2056
  %v2195 = vpop.permute.xlu0 %2194
  %2198 = vset.pattern.permute.xlu0 0
  %2199 = vperm.xlu0 %2198, %v2057
  %v2200 = vpop.permute.xlu0 %2199
  %2203 = vset.pattern.permute.xlu0 0
  %2204 = vperm.xlu0 %2203, %v2058
  %v2205 = vpop.permute.xlu0 %2204
  %2208 = vset.pattern.permute.xlu0 0
  %2209 = vperm.xlu0 %2208, %v2059
  %v2210 = vpop.permute.xlu0 %2209
  %2213 = vset.pattern.permute.xlu0 0
  %2214 = vperm.xlu0 %2213, %v2060
  %v2215 = vpop.permute.xlu0 %2214
  %2218 = vset.pattern.permute.xlu0 0
  %2219 = vperm.xlu0 %2218, %v2061
  %v2220 = vpop.permute.xlu0 %2219
  %2223 = vset.pattern.permute.xlu0 0
  %2224 = vperm.xlu0 %2223, %v2062
  %v2225 = vpop.permute.xlu0 %2224
  %2228 = vset.pattern.permute.xlu0 0
  %2229 = vperm.xlu0 %2228, %v2063
  %v2230 = vpop.permute.xlu0 %2229
  %2233 = vset.pattern.permute.xlu0 0
  %2234 = vperm.xlu0 %2233, %v2064
  %v2235 = vpop.permute.xlu0 %2234
  %2238 = vset.pattern.permute.xlu0 0
  %2239 = vperm.xlu0 %2238, %v2065
  %v2240 = vpop.permute.xlu0 %2239
  %2243 = vset.pattern.permute.xlu0 0
  %2244 = vperm.xlu0 %2243, %v2066
  %v2245 = vpop.permute.xlu0 %2244
  %2248 = vset.pattern.permute.xlu0 0
  %2249 = vperm.xlu0 %2248, %v2067
  %v2250 = vpop.permute.xlu0 %2249
  %2253 = vset.pattern.permute.xlu0 0
  %2254 = vperm.xlu0 %2253, %v2068
  %v2255 = vpop.permute.xlu0 %2254
  %2258 = vset.pattern.permute.xlu0 0
  %2259 = vperm.xlu0 %2258, %v2069
  %v2260 = vpop.permute.xlu0 %2259
  %v2262 = vmul.f32 %v816, %v2145
  %v2263 = vmul.f32 %v1350, %v2145
  %v2264 = vmul.f32 %v819, %v2150
  %v2265 = vmul.f32 %v1353, %v2150
  %v2266 = vmul.f32 %v822, %v2155
  %v2267 = vmul.f32 %v1356, %v2155
  %v2268 = vmul.f32 %v825, %v2160
  %v2269 = vmul.f32 %v1359, %v2160
  %v2270 = vmul.f32 %v828, %v2165
  %v2271 = vmul.f32 %v1362, %v2165
  %v2272 = vmul.f32 %v831, %v2170
  %v2273 = vmul.f32 %v1365, %v2170
  %v2274 = vmul.f32 %v834, %v2175
  %v2275 = vmul.f32 %v1368, %v2175
  %v2276 = vmul.f32 %v837, %v2180
  %v2277 = vmul.f32 %v1371, %v2180
  %v2278 = vmul.f32 %v840, %v2185
  %v2279 = vmul.f32 %v1374, %v2185
  %v2280 = vmul.f32 %v843, %v2190
  %v2281 = vmul.f32 %v1377, %v2190
  %v2282 = vmul.f32 %v846, %v2195
  %v2283 = vmul.f32 %v1380, %v2195
  %v2284 = vmul.f32 %v849, %v2200
  %v2285 = vmul.f32 %v1383, %v2200
  %v2286 = vmul.f32 %v852, %v2205
  %v2287 = vmul.f32 %v1386, %v2205
  %v2288 = vmul.f32 %v855, %v2210
  %v2289 = vmul.f32 %v1389, %v2210
  %v2290 = vmul.f32 %v858, %v2215
  %v2291 = vmul.f32 %v1392, %v2215
  %v2292 = vmul.f32 %v861, %v2220
  %v2293 = vmul.f32 %v1395, %v2220
  %v2294 = vmul.f32 %v864, %v2225
  %v2295 = vmul.f32 %v1398, %v2225
  %v2296 = vmul.f32 %v867, %v2230
  %v2297 = vmul.f32 %v1401, %v2230
  %v2298 = vmul.f32 %v870, %v2235
  %v2299 = vmul.f32 %v1404, %v2235
  %v2300 = vmul.f32 %v873, %v2240
  %v2301 = vmul.f32 %v1407, %v2240
  %v2302 = vmul.f32 %v876, %v2245
  %v2303 = vmul.f32 %v1410, %v2245
  %v2304 = vmul.f32 %v879, %v2250
  %v2305 = vmul.f32 %v1413, %v2250
  %v2306 = vmul.f32 %v882, %v2255
  %v2307 = vmul.f32 %v1416, %v2255
  %v2308 = vmul.f32 %v885, %v2260
  %v2309 = vmul.f32 %v1419, %v2260
  %2311 = vset.pattern.permute.xlu0 0
  %2312 = vperm.xlu0 %2311, %v2118
  %v2313 = vpop.permute.xlu0 %2312
  %2316 = vset.pattern.permute.xlu0 0
  %2317 = vperm.xlu0 %2316, %v2119
  %v2318 = vpop.permute.xlu0 %2317
  %2321 = vset.pattern.permute.xlu0 0
  %2322 = vperm.xlu0 %2321, %v2120
  %v2323 = vpop.permute.xlu0 %2322
  %2326 = vset.pattern.permute.xlu0 0
  %2327 = vperm.xlu0 %2326, %v2121
  %v2328 = vpop.permute.xlu0 %2327
  %2331 = vset.pattern.permute.xlu0 0
  %2332 = vperm.xlu0 %2331, %v2122
  %v2333 = vpop.permute.xlu0 %2332
  %2336 = vset.pattern.permute.xlu0 0
  %2337 = vperm.xlu0 %2336, %v2123
  %v2338 = vpop.permute.xlu0 %2337
  %2341 = vset.pattern.permute.xlu0 0
  %2342 = vperm.xlu0 %2341, %v2124
  %v2343 = vpop.permute.xlu0 %2342
  %2346 = vset.pattern.permute.xlu0 0
  %2347 = vperm.xlu0 %2346, %v2125
  %v2348 = vpop.permute.xlu0 %2347
  %2351 = vset.pattern.permute.xlu0 0
  %2352 = vperm.xlu0 %2351, %v2126
  %v2353 = vpop.permute.xlu0 %2352
  %2356 = vset.pattern.permute.xlu0 0
  %2357 = vperm.xlu0 %2356, %v2127
  %v2358 = vpop.permute.xlu0 %2357
  %2361 = vset.pattern.permute.xlu0 0
  %2362 = vperm.xlu0 %2361, %v2128
  %v2363 = vpop.permute.xlu0 %2362
  %2366 = vset.pattern.permute.xlu0 0
  %2367 = vperm.xlu0 %2366, %v2129
  %v2368 = vpop.permute.xlu0 %2367
  %2371 = vset.pattern.permute.xlu0 0
  %2372 = vperm.xlu0 %2371, %v2130
  %v2373 = vpop.permute.xlu0 %2372
  %2376 = vset.pattern.permute.xlu0 0
  %2377 = vperm.xlu0 %2376, %v2131
  %v2378 = vpop.permute.xlu0 %2377
  %2381 = vset.pattern.permute.xlu0 0
  %2382 = vperm.xlu0 %2381, %v2132
  %v2383 = vpop.permute.xlu0 %2382
  %2386 = vset.pattern.permute.xlu0 0
  %2387 = vperm.xlu0 %2386, %v2133
  %v2388 = vpop.permute.xlu0 %2387
  %2391 = vset.pattern.permute.xlu0 0
  %2392 = vperm.xlu0 %2391, %v2134
  %v2393 = vpop.permute.xlu0 %2392
  %2396 = vset.pattern.permute.xlu0 0
  %2397 = vperm.xlu0 %2396, %v2135
  %v2398 = vpop.permute.xlu0 %2397
  %2401 = vset.pattern.permute.xlu0 0
  %2402 = vperm.xlu0 %2401, %v2136
  %v2403 = vpop.permute.xlu0 %2402
  %2406 = vset.pattern.permute.xlu0 0
  %2407 = vperm.xlu0 %2406, %v2137
  %v2408 = vpop.permute.xlu0 %2407
  %2411 = vset.pattern.permute.xlu0 0
  %2412 = vperm.xlu0 %2411, %v2138
  %v2413 = vpop.permute.xlu0 %2412
  %2416 = vset.pattern.permute.xlu0 0
  %2417 = vperm.xlu0 %2416, %v2139
  %v2418 = vpop.permute.xlu0 %2417
  %2421 = vset.pattern.permute.xlu0 0
  %2422 = vperm.xlu0 %2421, %v2140
  %v2423 = vpop.permute.xlu0 %2422
  %2426 = vset.pattern.permute.xlu0 0
  %2427 = vperm.xlu0 %2426, %v2141
  %v2428 = vpop.permute.xlu0 %2427
  %v2430 = vadd.f32 %v2262, %v2313
  %v2431 = vadd.f32 %v2263, %v2313
  %v2432 = vadd.f32 %v2264, %v2318
  %v2433 = vadd.f32 %v2265, %v2318
  %v2434 = vadd.f32 %v2266, %v2323
  %v2435 = vadd.f32 %v2267, %v2323
  %v2436 = vadd.f32 %v2268, %v2328
  %v2437 = vadd.f32 %v2269, %v2328
  %v2438 = vadd.f32 %v2270, %v2333
  %v2439 = vadd.f32 %v2271, %v2333
  %v2440 = vadd.f32 %v2272, %v2338
  %v2441 = vadd.f32 %v2273, %v2338
  %v2442 = vadd.f32 %v2274, %v2343
  %v2443 = vadd.f32 %v2275, %v2343
  %v2444 = vadd.f32 %v2276, %v2348
  %v2445 = vadd.f32 %v2277, %v2348
  %v2446 = vadd.f32 %v2278, %v2353
  %v2447 = vadd.f32 %v2279, %v2353
  %v2448 = vadd.f32 %v2280, %v2358
  %v2449 = vadd.f32 %v2281, %v2358
  %v2450 = vadd.f32 %v2282, %v2363
  %v2451 = vadd.f32 %v2283, %v2363
  %v2452 = vadd.f32 %v2284, %v2368
  %v2453 = vadd.f32 %v2285, %v2368
  %v2454 = vadd.f32 %v2286, %v2373
  %v2455 = vadd.f32 %v2287, %v2373
  %v2456 = vadd.f32 %v2288, %v2378
  %v2457 = vadd.f32 %v2289, %v2378
  %v2458 = vadd.f32 %v2290, %v2383
  %v2459 = vadd.f32 %v2291, %v2383
  %v2460 = vadd.f32 %v2292, %v2388
  %v2461 = vadd.f32 %v2293, %v2388
  %v2462 = vadd.f32 %v2294, %v2393
  %v2463 = vadd.f32 %v2295, %v2393
  %v2464 = vadd.f32 %v2296, %v2398
  %v2465 = vadd.f32 %v2297, %v2398
  %v2466 = vadd.f32 %v2298, %v2403
  %v2467 = vadd.f32 %v2299, %v2403
  %v2468 = vadd.f32 %v2300, %v2408
  %v2469 = vadd.f32 %v2301, %v2408
  %v2470 = vadd.f32 %v2302, %v2413
  %v2471 = vadd.f32 %v2303, %v2413
  %v2472 = vadd.f32 %v2304, %v2418
  %v2473 = vadd.f32 %v2305, %v2418
  %v2474 = vadd.f32 %v2306, %v2423
  %v2475 = vadd.f32 %v2307, %v2423
  %v2476 = vadd.f32 %v2308, %v2428
  %v2477 = vadd.f32 %v2309, %v2428
  %2478 = vst [vmem:[%s4] sm:$0xff] %v2430
  %2479 = vst.msk [vmem:[%s4 + $0x8] sm:$0xff] %vm1421, %v2431
  %2480 = vst [vmem:[%s4 + $0x10] sm:$0xff] %v2432
  %2481 = vst.msk [vmem:[%s4 + $0x18] sm:$0xff] %vm1421, %v2433
  %2482 = vst [vmem:[%s4 + $0x20] sm:$0xff] %v2434
  %2483 = vst.msk [vmem:[%s4 + $0x28] sm:$0xff] %vm1421, %v2435
  %2484 = vst [vmem:[%s4 + $0x30] sm:$0xff] %v2436
  %2485 = vst.msk [vmem:[%s4 + $0x38] sm:$0xff] %vm1421, %v2437
  %2486 = vst [vmem:[%s4 + $0x40] sm:$0xff] %v2438
  %2487 = vst.msk [vmem:[%s4 + $0x48] sm:$0xff] %vm1421, %v2439
  %2488 = vst [vmem:[%s4 + $0x50] sm:$0xff] %v2440
  %2489 = vst.msk [vmem:[%s4 + $0x58] sm:$0xff] %vm1421, %v2441
  %2490 = vst [vmem:[%s4 + $0x60] sm:$0xff] %v2442
  %2491 = vst.msk [vmem:[%s4 + $0x68] sm:$0xff] %vm1421, %v2443
  %2492 = vst [vmem:[%s4 + $0x70] sm:$0xff] %v2444
  %2493 = vst.msk [vmem:[%s4 + $0x78] sm:$0xff] %vm1421, %v2445
  %2494 = vst [vmem:[%s4 + $0x80] sm:$0xff] %v2446
  %2495 = vst.msk [vmem:[%s4 + $0x88] sm:$0xff] %vm1421, %v2447
  %2496 = vst [vmem:[%s4 + $0x90] sm:$0xff] %v2448
  %2497 = vst.msk [vmem:[%s4 + $0x98] sm:$0xff] %vm1421, %v2449
  %2498 = vst [vmem:[%s4 + $0xa0] sm:$0xff] %v2450
  %2499 = vst.msk [vmem:[%s4 + $0xa8] sm:$0xff] %vm1421, %v2451
  %2500 = vst [vmem:[%s4 + $0xb0] sm:$0xff] %v2452
  %2501 = vst.msk [vmem:[%s4 + $0xb8] sm:$0xff] %vm1421, %v2453
  %2502 = vst [vmem:[%s4 + $0xc0] sm:$0xff] %v2454
  %2503 = vst.msk [vmem:[%s4 + $0xc8] sm:$0xff] %vm1421, %v2455
  %2504 = vst [vmem:[%s4 + $0xd0] sm:$0xff] %v2456
  %2505 = vst.msk [vmem:[%s4 + $0xd8] sm:$0xff] %vm1421, %v2457
  %2506 = vst [vmem:[%s4 + $0xe0] sm:$0xff] %v2458
  %2507 = vst.msk [vmem:[%s4 + $0xe8] sm:$0xff] %vm1421, %v2459
  %2508 = vst [vmem:[%s4 + $0xf0] sm:$0xff] %v2460
  %2509 = vst.msk [vmem:[%s4 + $0xf8] sm:$0xff] %vm1421, %v2461
  %2510 = vst [vmem:[%s4 + $0x100] sm:$0xff] %v2462
  %2511 = vst.msk [vmem:[%s4 + $0x108] sm:$0xff] %vm1421, %v2463
  %2512 = vst [vmem:[%s4 + $0x110] sm:$0xff] %v2464
  %2513 = vst.msk [vmem:[%s4 + $0x118] sm:$0xff] %vm1421, %v2465
  %2514 = vst [vmem:[%s4 + $0x120] sm:$0xff] %v2466
  %2515 = vst.msk [vmem:[%s4 + $0x128] sm:$0xff] %vm1421, %v2467
  %2516 = vst [vmem:[%s4 + $0x130] sm:$0xff] %v2468
  %2517 = vst.msk [vmem:[%s4 + $0x138] sm:$0xff] %vm1421, %v2469
  %2518 = vst [vmem:[%s4 + $0x140] sm:$0xff] %v2470
  %2519 = vst.msk [vmem:[%s4 + $0x148] sm:$0xff] %vm1421, %v2471
  %2520 = vst [vmem:[%s4 + $0x150] sm:$0xff] %v2472
  %2521 = vst.msk [vmem:[%s4 + $0x158] sm:$0xff] %vm1421, %v2473
  %2522 = vst [vmem:[%s4 + $0x160] sm:$0xff] %v2474
  %2523 = vst.msk [vmem:[%s4 + $0x168] sm:$0xff] %vm1421, %v2475
  %2524 = vst [vmem:[%s4 + $0x170] sm:$0xff] %v2476
  %2525 = vst.msk [vmem:[%s4 + $0x178] sm:$0xff] %vm1421, %v2477
  // Predicated region
  $region18: #{tpu_custom_call.1} parent=0 // pred_check
    _
  $region19: #{tpu_custom_call.1} parent=0 // pred_check_branch
    %2527 = sbr.rel (0) target = $region21
  $region20: #{tpu_custom_call.1} parent=0 // pred_region
    _
  $region21: #{tpu_custom_call.1} parent=0 // pred_fallthru
    _
  // Predicated region
  $region22: #{tpu_custom_call.1} parent=0 // pred_check
    _
  $region23: #{tpu_custom_call.1} parent=0 // pred_check_branch
    %2529 = sbr.rel (0) target = $region25
  $region24: #{tpu_custom_call.1} parent=0 // pred_region
    _
  $region25: #{tpu_custom_call.1} parent=0 // pred_fallthru
    _

</llo_original>
